<compile_context>
chip_gen: v6e
topology: v6e:2x2x1
jax: 0.10.0
libtpu: 0.0.40
codegen_flags: <defaults>
</compile_context>

<pallas_src>
import jax
import jax.numpy as jnp
from jax import lax
from jax.experimental import pallas as pl
from jax.experimental.pallas import tpu as pltpu

F1 = 640          # mobilevit_s num_features
F2 = 512          # poolformer_s12 num_features
D = 512           # per-encoder head width / fusion output width
LN_EPS = 1e-5     # torch.nn.LayerNorm default eps
INV_SQRT2 = 0.7071067811865476


def _fused_head_kernel(f1_ref, f2_ref, w1_ref, w2_ref, b_ref, g_ref, be_ref,
                       o_ref):
    # Folded (enc1 | enc2 | fusion) linear: bf16 operands, f32 MXU accumulation.
    y = (jnp.dot(f1_ref[...], w1_ref[...], preferred_element_type=jnp.float32)
         + jnp.dot(f2_ref[...], w2_ref[...], preferred_element_type=jnp.float32)
         + b_ref[...])

    # exact GELU (PyTorch nn.GELU default, erf form) — EUP transcendental.
    y = 0.5 * y * (1.0 + lax.erf(y * INV_SQRT2))

    # LayerNorm over last dim (biased variance, eps=1e-5), affine.
    mean = jnp.mean(y, axis=-1, keepdims=True)
    var = jnp.mean((y - mean) ** 2, axis=-1, keepdims=True)
    o_ref[...] = (y - mean) * lax.rsqrt(var + LN_EPS) * g_ref[...] + be_ref[...]


def init_params(key, c_in):
    ks = jax.random.split(key, 8)

    def rnd(k, shape, scale):
        return (jax.random.normal(k, shape, jnp.float32) * scale).astype(jnp.float32)

    return {
        # backbone stubs (replace timm feature extractors)
        "bb1_w": rnd(ks[0], (c_in, F1), 0.05),
        "bb2_w": rnd(ks[1], (c_in, F2), 0.05),
        # nn.Linear(model.num_features, 512) for each encoder
        "enc1_w": rnd(ks[2], (F1, D), 1.0 / (F1 ** 0.5)),
        "enc1_b": rnd(ks[3], (D,), 0.01),
        "enc2_w": rnd(ks[4], (F2, D), 1.0 / (F2 ** 0.5)),
        "enc2_b": rnd(ks[5], (D,), 0.01),
        # fusion_proj: nn.Linear(1024, 512) -> GELU -> LayerNorm(512)
        "fuse_w": rnd(ks[6], (2 * D, D), 1.0 / ((2 * D) ** 0.5)),
        "fuse_b": rnd(ks[7], (D,), 0.01),
        "ln_g": jnp.ones((D,), jnp.float32),
        "ln_b": jnp.zeros((D,), jnp.float32),
    }


def fold_params(params):
    """One-time algebraic folding of enc1/enc2 heads into the fusion linear.

    Valid because there is no nonlinearity between them:
      cat([f1@W1+b1, f2@W2+b2]) @ Wf + bf
        = f1 @ (W1 @ Wf_top) + f2 @ (W2 @ Wf_bot) + (b1@Wf_top + b2@Wf_bot + bf)
    Folded weights go to bf16 for the MXU; bias / LN affine stay f32.
    """
    wf = params["fuse_w"]
    w1p = (params["enc1_w"] @ wf[:D, :]).astype(jnp.bfloat16)        # [F1, D]
    w2p = (params["enc2_w"] @ wf[D:, :]).astype(jnp.bfloat16)        # [F2, D]
    b = (params["enc1_b"] @ wf[:D, :] + params["enc2_b"] @ wf[D:, :]
         + params["fuse_b"]).reshape(1, D).astype(jnp.float32)
    return {
        "bb1_w": params["bb1_w"],
        "bb2_w": params["bb2_w"],
        "w1p": w1p,
        "w2p": w2p,
        "b": b,
        "ln_g": params["ln_g"].reshape(1, D).astype(jnp.float32),
        "ln_b": params["ln_b"].reshape(1, D).astype(jnp.float32),
    }


def fused_visual_encoder(x, fp, *, tb=256):
    """x: [B, C, H, W] float32 (NCHW, as in PyTorch). Returns [B, 512] f32."""
    B = x.shape[0]

    # TODO(synk): timm MobileViT / PoolFormer backbones not translatable to a
    # single Pallas kernel; stubbed here (plain-JAX glue) as GAP + linear.
    pooled = jnp.mean(x.astype(jnp.float32), axis=(2, 3))            # [B, C]
    f1 = (pooled @ fp["bb1_w"]).astype(jnp.bfloat16)                 # [B, F1]
    f2 = (pooled @ fp["bb2_w"]).astype(jnp.bfloat16)                 # [B, F2]

    # Batch tile: sublane-aligned (multiple of 8), capped at `tb` rows so the
    # double-buffered activation tiles + resident weights comfortably fit the
    # scoped-VMEM default on v5e (16 MiB) / v6e / v7x.
    TB = min(tb, ((B + 7) // 8) * 8)
    Bp = ((B + TB - 1) // TB) * TB
    if Bp != B:
        f1 = jnp.pad(f1, ((0, Bp - B), (0, 0)))
        f2 = jnp.pad(f2, ((0, Bp - B), (0, 0)))

    out = pl.pallas_call(
        _fused_head_kernel,
        out_shape=jax.ShapeDtypeStruct((Bp, D), jnp.float32),
        grid=(Bp // TB,),
        in_specs=[
            # batch-tiled activations (double-buffered across grid steps)
            pl.BlockSpec((TB, F1), lambda i: (i, 0)),
            pl.BlockSpec((TB, F2), lambda i: (i, 0)),
            # constant-index weights / biases: same block every step,
            # so they stay VMEM-resident across grid iterations.
            pl.BlockSpec((F1, D), lambda i: (0, 0)),
            pl.BlockSpec((F2, D), lambda i: (0, 0)),
            pl.BlockSpec((1, D), lambda i: (0, 0)),
            pl.BlockSpec((1, D), lambda i: (0, 0)),
            pl.BlockSpec((1, D), lambda i: (0, 0)),
        ],
        out_specs=pl.BlockSpec((TB, D), lambda i: (i, 0)),
        compiler_params=pltpu.CompilerParams(
            # batch tiles are independent -> megacore sharding on v7x
            dimension_semantics=("parallel",)),
    )(f1, f2, fp["w1p"], fp["w2p"], fp["b"], fp["ln_g"], fp["ln_b"])
    return out[:B]


def _reference(x, params):
    """Pure-JAX f32 reference of the unfused math (for correctness check)."""
    pooled = jnp.mean(x.astype(jnp.float32), axis=(2, 3))
    f1 = pooled @ params["bb1_w"]
    f2 = pooled @ params["bb2_w"]
    e1 = f1 @ params["enc1_w"] + params["enc1_b"]
    e2 = f2 @ params["enc2_w"] + params["enc2_b"]
    fused = jnp.concatenate([e1, e2], axis=-1)
    y = fused @ params["fuse_w"] + params["fuse_b"]
    y = 0.5 * y * (1.0 + lax.erf(y * INV_SQRT2))
    mean = jnp.mean(y, axis=-1, keepdims=True)
    var = jnp.mean((y - mean) ** 2, axis=-1, keepdims=True)
    yhat = (y - mean) / jnp.sqrt(var + LN_EPS)
    return yhat * params["ln_g"] + params["ln_b"]


if __name__ == "__main__":
    key = jax.random.PRNGKey(0)
    kx, kp = jax.random.split(key)

    B, C, H, W = 2, 4, 16, 16
    x = jax.random.normal(kx, (B, C, H, W), jnp.float32)
    params = init_params(kp, C)
    fp = fold_params(params)          # one-time weight folding (inference)

    out = jax.block_until_ready(fused_visual_encoder(x, fp))
    ref = jax.block_until_ready(_reference(x, params))

    assert out.shape == (B, D)
    # bf16 matmuls on folded weights vs pure-f32 unfused reference.
    assert jnp.allclose(out, ref, atol=5e-2, rtol=5e-2), "mismatch vs reference"

    print("KERNEL_OK")
</pallas_src>

<mosaic_0001>
module attributes {stable_mosaic.version = 11 : i64} {
  func.func @_fused_head_kernel(%arg0: i32, %arg1: memref<8x640xbf16, #tpu.memory_space<vmem>>, %arg2: memref<8x512xbf16, #tpu.memory_space<vmem>>, %arg3: memref<640x512xbf16, #tpu.memory_space<vmem>>, %arg4: memref<512x512xbf16, #tpu.memory_space<vmem>>, %arg5: memref<1x512xf32, #tpu.memory_space<vmem>>, %arg6: memref<1x512xf32, #tpu.memory_space<vmem>>, %arg7: memref<1x512xf32, #tpu.memory_space<vmem>>, %arg8: memref<8x512xf32, #tpu.memory_space<vmem>>) attributes {dimension_semantics = [#tpu.dimension_semantics<parallel>], iteration_bounds = array<i64: 1>, scalar_prefetch = 0 : i64, scratch_operands = 0 : i64, tpu.core_type = #tpu.core_type<tc>, window_params = [{transform_indices = @transform_0, window_bounds = array<i64: 8, 640>}, {transform_indices = @transform_1, window_bounds = array<i64: 8, 512>}, {pipeline_mode = #tpu.pipeline_mode<synchronous>, transform_indices = @transform_2, window_bounds = array<i64: 640, 512>}, {pipeline_mode = #tpu.pipeline_mode<synchronous>, transform_indices = @transform_3, window_bounds = array<i64: 512, 512>}, {pipeline_mode = #tpu.pipeline_mode<synchronous>, transform_indices = @transform_4, window_bounds = array<i64: 1, 512>}, {pipeline_mode = #tpu.pipeline_mode<synchronous>, transform_indices = @transform_5, window_bounds = array<i64: 1, 512>}, {pipeline_mode = #tpu.pipeline_mode<synchronous>, transform_indices = @transform_6, window_bounds = array<i64: 1, 512>}, {transform_indices = @transform_7, window_bounds = array<i64: 8, 512>}]} {
    %c0 = arith.constant 0 : index
    %c0_0 = arith.constant 0 : index
    %0 = vector.load %arg1[%c0, %c0_0] : memref<8x640xbf16, #tpu.memory_space<vmem>>, vector<8x640xbf16>
    %c0_1 = arith.constant 0 : index
    %c0_2 = arith.constant 0 : index
    %1 = vector.load %arg3[%c0_1, %c0_2] : memref<640x512xbf16, #tpu.memory_space<vmem>>, vector<640x512xbf16>
    %cst = arith.constant dense<0.000000e+00> : vector<8x512xf32>
    %2 = tpu.matmul %0, %1, %cst {dimension_numbers = #tpu.dot_dimension_numbers<[1], [0], [0], [1], [0, 0, 1, 1], [], []>} : vector<8x640xbf16>, vector<640x512xbf16>, vector<8x512xf32> -> vector<8x512xf32>
    %c0_3 = arith.constant 0 : index
    %c0_4 = arith.constant 0 : index
    %3 = vector.load %arg2[%c0_3, %c0_4] : memref<8x512xbf16, #tpu.memory_space<vmem>>, vector<8x512xbf16>
    %c0_5 = arith.constant 0 : index
    %c0_6 = arith.constant 0 : index
    %4 = vector.load %arg4[%c0_5, %c0_6] : memref<512x512xbf16, #tpu.memory_space<vmem>>, vector<512x512xbf16>
    %cst_7 = arith.constant dense<0.000000e+00> : vector<8x512xf32>
    %5 = tpu.matmul %3, %4, %cst_7 {dimension_numbers = #tpu.dot_dimension_numbers<[1], [0], [0], [1], [0, 0, 1, 1], [], []>} : vector<8x512xbf16>, vector<512x512xbf16>, vector<8x512xf32> -> vector<8x512xf32>
    %6 = arith.addf %2, %5 : vector<8x512xf32>
    %c0_8 = arith.constant 0 : index
    %c0_9 = arith.constant 0 : index
    %7 = vector.load %arg5[%c0_8, %c0_9] : memref<1x512xf32, #tpu.memory_space<vmem>>, vector<1x512xf32>
    %8 = vector.broadcast %7 : vector<1x512xf32> to vector<8x512xf32>
    %9 = arith.addf %6, %8 : vector<8x512xf32>
    %cst_10 = arith.constant 5.000000e-01 : f32
    %10 = vector.broadcast %cst_10 : f32 to vector<8x512xf32>
    %11 = arith.mulf %10, %9 : vector<8x512xf32>
    %cst_11 = arith.constant 0.707106769 : f32
    %12 = vector.broadcast %cst_11 : f32 to vector<8x512xf32>
    %13 = arith.mulf %9, %12 : vector<8x512xf32>
    %14 = math.erf %13 : vector<8x512xf32>
    %cst_12 = arith.constant 1.000000e+00 : f32
    %15 = vector.broadcast %cst_12 : f32 to vector<8x512xf32>
    %16 = arith.addf %15, %14 : vector<8x512xf32>
    %17 = arith.mulf %11, %16 : vector<8x512xf32>
    %cst_13 = arith.constant dense<0.000000e+00> : vector<8xf32>
    %18 = vector.multi_reduction <add>, %17, %cst_13 [1] : vector<8x512xf32> to vector<8xf32>
    %19 = vector.shape_cast %18 : vector<8xf32> to vector<8x1xf32>
    %cst_14 = arith.constant 5.120000e+02 : f32
    %20 = vector.broadcast %cst_14 : f32 to vector<8x1xf32>
    %21 = arith.divf %19, %20 : vector<8x1xf32>
    %22 = vector.broadcast %21 : vector<8x1xf32> to vector<8x512xf32>
    %23 = arith.subf %17, %22 : vector<8x512xf32>
    %24 = arith.mulf %23, %23 : vector<8x512xf32>
    %cst_15 = arith.constant dense<0.000000e+00> : vector<8xf32>
    %25 = vector.multi_reduction <add>, %24, %cst_15 [1] : vector<8x512xf32> to vector<8xf32>
    %26 = vector.shape_cast %25 : vector<8xf32> to vector<8x1xf32>
    %cst_16 = arith.constant 5.120000e+02 : f32
    %27 = vector.broadcast %cst_16 : f32 to vector<8x1xf32>
    %28 = arith.divf %26, %27 : vector<8x1xf32>
    %29 = vector.broadcast %21 : vector<8x1xf32> to vector<8x512xf32>
    %30 = arith.subf %17, %29 : vector<8x512xf32>
    %cst_17 = arith.constant 9.99999974E-6 : f32
    %31 = vector.broadcast %cst_17 : f32 to vector<8x1xf32>
    %32 = arith.addf %28, %31 : vector<8x1xf32>
    %33 = math.rsqrt %32 : vector<8x1xf32>
    %34 = vector.broadcast %33 : vector<8x1xf32> to vector<8x512xf32>
    %35 = arith.mulf %30, %34 : vector<8x512xf32>
    %c0_18 = arith.constant 0 : index
    %c0_19 = arith.constant 0 : index
    %36 = vector.load %arg6[%c0_18, %c0_19] : memref<1x512xf32, #tpu.memory_space<vmem>>, vector<1x512xf32>
    %37 = vector.broadcast %36 : vector<1x512xf32> to vector<8x512xf32>
    %38 = arith.mulf %35, %37 : vector<8x512xf32>
    %c0_20 = arith.constant 0 : index
    %c0_21 = arith.constant 0 : index
    %39 = vector.load %arg7[%c0_20, %c0_21] : memref<1x512xf32, #tpu.memory_space<vmem>>, vector<1x512xf32>
    %40 = vector.broadcast %39 : vector<1x512xf32> to vector<8x512xf32>
    %41 = arith.addf %38, %40 : vector<8x512xf32>
    %c0_22 = arith.constant 0 : index
    %c0_23 = arith.constant 0 : index
    %42 = vector.load %arg8[%c0_22, %c0_23] : memref<8x512xf32, #tpu.memory_space<vmem>>, vector<8x512xf32>
    tpu.vector_store %arg8[%c0_22, %c0_23], %41 {strides = array<i32>} : memref<8x512xf32, #tpu.memory_space<vmem>>, vector<8x512xf32>,
    return
  }
  func.func @transform_0(%arg0: i32) -> (i32, i32) {
    %c0_i32 = arith.constant 0 : i32
    %c0_i32_0 = arith.constant 0 : i32
    return %arg0, %c0_i32 : i32, i32
  }
  func.func @transform_1(%arg0: i32) -> (i32, i32) {
    %c0_i32 = arith.constant 0 : i32
    %c0_i32_0 = arith.constant 0 : i32
    return %arg0, %c0_i32 : i32, i32
  }
  func.func @transform_2(%arg0: i32) -> (i32, i32) {
    %c0_i32 = arith.constant 0 : i32
    %c0_i32_0 = arith.constant 0 : i32
    %c0_i32_1 = arith.constant 0 : i32
    return %c0_i32, %c0_i32_0 : i32, i32
  }
  func.func @transform_3(%arg0: i32) -> (i32, i32) {
    %c0_i32 = arith.constant 0 : i32
    %c0_i32_0 = arith.constant 0 : i32
    %c0_i32_1 = arith.constant 0 : i32
    return %c0_i32, %c0_i32_0 : i32, i32
  }
  func.func @transform_4(%arg0: i32) -> (i32, i32) {
    %c0_i32 = arith.constant 0 : i32
    %c0_i32_0 = arith.constant 0 : i32
    %c0_i32_1 = arith.constant 0 : i32
    return %c0_i32, %c0_i32_0 : i32, i32
  }
  func.func @transform_5(%arg0: i32) -> (i32, i32) {
    %c0_i32 = arith.constant 0 : i32
    %c0_i32_0 = arith.constant 0 : i32
    %c0_i32_1 = arith.constant 0 : i32
    return %c0_i32, %c0_i32_0 : i32, i32
  }
  func.func @transform_6(%arg0: i32) -> (i32, i32) {
    %c0_i32 = arith.constant 0 : i32
    %c0_i32_0 = arith.constant 0 : i32
    %c0_i32_1 = arith.constant 0 : i32
    return %c0_i32, %c0_i32_0 : i32, i32
  }
  func.func @transform_7(%arg0: i32) -> (i32, i32) {
    %c0_i32 = arith.constant 0 : i32
    %c0_i32_0 = arith.constant 0 : i32
    return %arg0, %c0_i32 : i32, i32
  }
}

</mosaic_0001>

<llo_original>
// kernel: tpu_custom_call.1
$region0: #{tpu_custom_call.1}
  #allocation0 [shape = 'u32[]', space=smem, size = 0x4, offset = 0x4, fixed_abs, tag = 'smem constant byte address 0x4 - core index']
  #allocation1 [shape = 'u32[144,128]{1,0:T(1,128)}', space=vmem, size = 0x12000, scoped, tag = 'internal scratch']
  %s0 = inlined_call_operand.hbm [shape: bf16[8,640], index: 0, kind: input, shape index: {}]
  %s1 = inlined_call_operand.hbm [shape: bf16[8,512], index: 1, kind: input, shape index: {}]
  %s2 = inlined_call_operand.hbm [shape: bf16[640,512], index: 2, kind: input, shape index: {}]
  %s3 = inlined_call_operand.hbm [shape: bf16[512,512], index: 3, kind: input, shape index: {}]
  %s4 = inlined_call_operand.vmem [shape: f32[1,512], index: 4, kind: input, shape index: {}]
  %s5 = inlined_call_operand.vmem [shape: f32[1,512], index: 5, kind: input, shape index: {}]
  %s6 = inlined_call_operand.hbm [shape: f32[1,512], index: 6, kind: input, shape index: {}]
  %s7 = inlined_call_operand.hbm [shape: f32[8,512], index: 7, kind: output, shape index: {}]
  %s8 = sld [smem:[#allocation0]]
  $region58: #{tpu_custom_call.1} parent=0
    _
  %s10 = ssub.s32 1, %s8
  %s11 = scalar_select 0, %s10, %s8
  $region1: #{tpu_custom_call.1} parent=0
    #allocation2 [shape = 'u8[10240]{0}', space=vmem, size = 0x2800, scoped, tag = 'input window, operand 0, single buffered']
    #allocation3 [shape = 's32[1]{0}', space=sflag, size = 0x4, scoped, tag = 'scoped memory for tpu_custom_call.1']
    #allocation4 [shape = 's32[1]{0}', space=sflag, size = 0x4, scoped, tag = 'scoped memory for tpu_custom_call.1']
    #allocation5 [shape = 'u8[8192]{0}', space=vmem, size = 0x2000, scoped, tag = 'input window, operand 1, single buffered']
    #allocation6 [shape = 's32[1]{0}', space=sflag, size = 0x4, scoped, tag = 'scoped memory for tpu_custom_call.1']
    #allocation7 [shape = 'u8[655360]{0}', space=vmem, size = 0xa0000, scoped, tag = 'input window, operand 2, single buffered']
    #allocation8 [shape = 'u8[524288]{0}', space=vmem, size = 0x80000, scoped, tag = 'input window, operand 3, single buffered']
    #allocation9 [shape = 's32[1]{0}', space=sflag, size = 0x4, scoped, tag = 'scoped memory for tpu_custom_call.1']
    #allocation10 [shape = 'u8[2048]{0}', space=vmem, size = 0x800, scoped, tag = 'input window, operand 6, single buffered']
    #allocation11 [shape = 'u8[16384]{0}', space=vmem, size = 0x4000, scoped, tag = 'output window, operand 0, single buffered']
    %12 = vsyncpa [#allocation3], 0
    %13 = vsyncpa [#allocation6], 0
    %14 = vsyncpa [#allocation9], 0
    %15 = vsyncpa [#allocation4], 0
    // Predicated region
    $region2: #{tpu_custom_call.1} parent=1 // pred_check
      _
    $region3: #{tpu_custom_call.1} parent=1 // pred_check_branch
      %17 = sbr.rel (0) target = $region5
    $region4: #{tpu_custom_call.1} parent=1 // pred_region
      %s19 = ssub.s32 320, 320
      %20 = vsyncadd [#allocation3], %s19
      %s22 = sshll.u32 [#allocation2], 4
      %s23 = int_to_ptr.vmem [resolvable:$true] %s22
      %25 = dma.hbm_to_vmem [thread:$0]  %s0, 320, %s23, [#allocation3]
    $region5: #{tpu_custom_call.1} parent=1 // pred_fallthru
      _
    // Predicated region
    $region6: #{tpu_custom_call.1} parent=1 // pred_check
      _
    $region7: #{tpu_custom_call.1} parent=1 // pred_check_branch
      %27 = sbr.rel (0) target = $region9
    $region8: #{tpu_custom_call.1} parent=1 // pred_region
      %s29 = ssub.s32 256, 256
      %30 = vsyncadd [#allocation6], %s29
      %s32 = sshll.u32 [#allocation5], 4
      %s33 = int_to_ptr.vmem [resolvable:$true] %s32
      %35 = dma.hbm_to_vmem [thread:$0]  %s1, 256, %s33, [#allocation6]
    $region9: #{tpu_custom_call.1} parent=1 // pred_fallthru
      _
    // Predicated region
    $region10: #{tpu_custom_call.1} parent=1 // pred_check
      _
    $region11: #{tpu_custom_call.1} parent=1 // pred_check_branch
      %37 = sbr.rel (0) target = $region13
    $region12: #{tpu_custom_call.1} parent=1 // pred_region
      %s39 = ssub.s32 20480, 20480
      %40 = vsyncadd [#allocation6], %s39
      %s41 = sshll.u32 [#allocation7], 4
      %s42 = int_to_ptr.vmem [resolvable:$true] %s41
      %47 = dma.hbm_to_vmem [thread:$0]  %s2, 20480, %s42, [#allocation6], 256, 256, 16
    $region13: #{tpu_custom_call.1} parent=1 // pred_fallthru
      _
    // Predicated region
    $region14: #{tpu_custom_call.1} parent=1 // pred_check
      _
    $region15: #{tpu_custom_call.1} parent=1 // pred_check_branch
      %49 = sbr.rel (0) target = $region17
    $region16: #{tpu_custom_call.1} parent=1 // pred_region
      %s51 = ssub.s32 16384, 16384
      %52 = vsyncadd [#allocation9], %s51
      %s53 = sshll.u32 [#allocation8], 4
      %s54 = int_to_ptr.vmem [resolvable:$true] %s53
      %59 = dma.hbm_to_vmem [thread:$0]  %s3, 16384, %s54, [#allocation9], 256, 256, 16
    $region17: #{tpu_custom_call.1} parent=1 // pred_fallthru
      _
    // Predicated region
    $region18: #{tpu_custom_call.1} parent=1 // pred_check
      _
    $region19: #{tpu_custom_call.1} parent=1 // pred_check_branch
      %61 = sbr.rel (0) target = $region21
    $region20: #{tpu_custom_call.1} parent=1 // pred_region
      _
    $region21: #{tpu_custom_call.1} parent=1 // pred_fallthru
      _
    // Predicated region
    $region22: #{tpu_custom_call.1} parent=1 // pred_check
      _
    $region23: #{tpu_custom_call.1} parent=1 // pred_check_branch
      %63 = sbr.rel (0) target = $region25
    $region24: #{tpu_custom_call.1} parent=1 // pred_region
      _
    $region25: #{tpu_custom_call.1} parent=1 // pred_fallthru
      _
    // Predicated region
    $region26: #{tpu_custom_call.1} parent=1 // pred_check
      _
    $region27: #{tpu_custom_call.1} parent=1 // pred_check_branch
      %65 = sbr.rel (0) target = $region29
    $region28: #{tpu_custom_call.1} parent=1 // pred_region
      %s67 = ssub.s32 64, 64
      %68 = vsyncadd [#allocation9], %s67
      %s70 = sshll.u32 [#allocation10], 4
      %s71 = int_to_ptr.vmem [resolvable:$true] %s70
      %73 = dma.hbm_to_vmem [thread:$0]  %s6, 64, %s71, [#allocation9]
    $region29: #{tpu_custom_call.1} parent=1 // pred_fallthru
      _
    // Predicated region
    $region30: #{tpu_custom_call.1} parent=1 // pred_check
      _
    $region31: #{tpu_custom_call.1} parent=1 // pred_check_branch
      %75 = sbr.rel (0) target = $region33
    $region32: #{tpu_custom_call.1} parent=1 // pred_region
      %76 = dma.done [#allocation3], 320
    $region33: #{tpu_custom_call.1} parent=1 // pred_fallthru
      _
    // Predicated region
    $region34: #{tpu_custom_call.1} parent=1 // pred_check
      _
    $region35: #{tpu_custom_call.1} parent=1 // pred_check_branch
      %78 = sbr.rel (0) target = $region37
    $region36: #{tpu_custom_call.1} parent=1 // pred_region
      %79 = dma.done [#allocation6], 256
    $region37: #{tpu_custom_call.1} parent=1 // pred_fallthru
      _
    // Predicated region
    $region38: #{tpu_custom_call.1} parent=1 // pred_check
      _
    $region39: #{tpu_custom_call.1} parent=1 // pred_check_branch
      %81 = sbr.rel (0) target = $region41
    $region40: #{tpu_custom_call.1} parent=1 // pred_region
      %82 = dma.done [#allocation6], 20480
    $region41: #{tpu_custom_call.1} parent=1 // pred_fallthru
      _
    // Predicated region
    $region42: #{tpu_custom_call.1} parent=1 // pred_check
      _
    $region43: #{tpu_custom_call.1} parent=1 // pred_check_branch
      %84 = sbr.rel (0) target = $region45
    $region44: #{tpu_custom_call.1} parent=1 // pred_region
      %85 = dma.done [#allocation9], 16384
    $region45: #{tpu_custom_call.1} parent=1 // pred_fallthru
      _
    // Predicated region
    $region46: #{tpu_custom_call.1} parent=1 // pred_check
      _
    $region47: #{tpu_custom_call.1} parent=1 // pred_check_branch
      %87 = sbr.rel (0) target = $region49
    $region48: #{tpu_custom_call.1} parent=1 // pred_region
      %88 = dma.done [#allocation9], 64
    $region49: #{tpu_custom_call.1} parent=1 // pred_fallthru
      _
    %v90 = vld [vmem:[#allocation2] sm:$0xff]
    %v91 = vld [vmem:[#allocation2 + $0x8] sm:$0xff]
    %v92 = vld [vmem:[#allocation2 + $0x10] sm:$0xf]
    %v93 = vld [vmem:[#allocation7] sm:$0xff]
    %v94 = vld [vmem:[#allocation7 + $0x8] sm:$0xff]
    %v95 = vld [vmem:[#allocation7 + $0x10] sm:$0xff]
    %v96 = vld [vmem:[#allocation7 + $0x18] sm:$0xff]
    %v97 = vld [vmem:[#allocation7 + $0x20] sm:$0xff]
    %v98 = vld [vmem:[#allocation7 + $0x28] sm:$0xff]
    %v99 = vld [vmem:[#allocation7 + $0x30] sm:$0xff]
    %v100 = vld [vmem:[#allocation7 + $0x38] sm:$0xff]
    %v101 = vld [vmem:[#allocation7 + $0x40] sm:$0xff]
    %v102 = vld [vmem:[#allocation7 + $0x48] sm:$0xff]
    %v103 = vld [vmem:[#allocation7 + $0x50] sm:$0xff]
    %v104 = vld [vmem:[#allocation7 + $0x58] sm:$0xff]
    %v105 = vld [vmem:[#allocation7 + $0x60] sm:$0xff]
    %v106 = vld [vmem:[#allocation7 + $0x68] sm:$0xff]
    %v107 = vld [vmem:[#allocation7 + $0x70] sm:$0xff]
    %v108 = vld [vmem:[#allocation7 + $0x78] sm:$0xff]
    %v109 = vld [vmem:[#allocation7 + $0x80] sm:$0xff]
    %v110 = vld [vmem:[#allocation7 + $0x88] sm:$0xff]
    %v111 = vld [vmem:[#allocation7 + $0x90] sm:$0xff]
    %v112 = vld [vmem:[#allocation7 + $0x98] sm:$0xff]
    %v113 = vld [vmem:[#allocation7 + $0xa0] sm:$0xff]
    %v114 = vld [vmem:[#allocation7 + $0xa8] sm:$0xff]
    %v115 = vld [vmem:[#allocation7 + $0xb0] sm:$0xff]
    %v116 = vld [vmem:[#allocation7 + $0xb8] sm:$0xff]
    %v117 = vld [vmem:[#allocation7 + $0xc0] sm:$0xff]
    %v118 = vld [vmem:[#allocation7 + $0xc8] sm:$0xff]
    %v119 = vld [vmem:[#allocation7 + $0xd0] sm:$0xff]
    %v120 = vld [vmem:[#allocation7 + $0xd8] sm:$0xff]
    %v121 = vld [vmem:[#allocation7 + $0xe0] sm:$0xff]
    %v122 = vld [vmem:[#allocation7 + $0xe8] sm:$0xff]
    %v123 = vld [vmem:[#allocation7 + $0xf0] sm:$0xff]
    %v124 = vld [vmem:[#allocation7 + $0xf8] sm:$0xff]
    %v125 = vld [vmem:[#allocation7 + $0x100] sm:$0xff]
    %v126 = vld [vmem:[#allocation7 + $0x108] sm:$0xff]
    %v127 = vld [vmem:[#allocation7 + $0x110] sm:$0xff]
    %v128 = vld [vmem:[#allocation7 + $0x118] sm:$0xff]
    %v129 = vld [vmem:[#allocation7 + $0x120] sm:$0xff]
    %v130 = vld [vmem:[#allocation7 + $0x128] sm:$0xff]
    %v131 = vld [vmem:[#allocation7 + $0x130] sm:$0xff]
    %v132 = vld [vmem:[#allocation7 + $0x138] sm:$0xff]
    %v133 = vld [vmem:[#allocation7 + $0x140] sm:$0xff]
    %v134 = vld [vmem:[#allocation7 + $0x148] sm:$0xff]
    %v135 = vld [vmem:[#allocation7 + $0x150] sm:$0xff]
    %v136 = vld [vmem:[#allocation7 + $0x158] sm:$0xff]
    %v137 = vld [vmem:[#allocation7 + $0x160] sm:$0xff]
    %v138 = vld [vmem:[#allocation7 + $0x168] sm:$0xff]
    %v139 = vld [vmem:[#allocation7 + $0x170] sm:$0xff]
    %v140 = vld [vmem:[#allocation7 + $0x178] sm:$0xff]
    %v141 = vld [vmem:[#allocation7 + $0x180] sm:$0xff]
    %v142 = vld [vmem:[#allocation7 + $0x188] sm:$0xff]
    %v143 = vld [vmem:[#allocation7 + $0x190] sm:$0xff]
    %v144 = vld [vmem:[#allocation7 + $0x198] sm:$0xff]
    %v145 = vld [vmem:[#allocation7 + $0x1a0] sm:$0xff]
    %v146 = vld [vmem:[#allocation7 + $0x1a8] sm:$0xff]
    %v147 = vld [vmem:[#allocation7 + $0x1b0] sm:$0xff]
    %v148 = vld [vmem:[#allocation7 + $0x1b8] sm:$0xff]
    %v149 = vld [vmem:[#allocation7 + $0x1c0] sm:$0xff]
    %v150 = vld [vmem:[#allocation7 + $0x1c8] sm:$0xff]
    %v151 = vld [vmem:[#allocation7 + $0x1d0] sm:$0xff]
    %v152 = vld [vmem:[#allocation7 + $0x1d8] sm:$0xff]
    %v153 = vld [vmem:[#allocation7 + $0x1e0] sm:$0xff]
    %v154 = vld [vmem:[#allocation7 + $0x1e8] sm:$0xff]
    %v155 = vld [vmem:[#allocation7 + $0x1f0] sm:$0xff]
    %v156 = vld [vmem:[#allocation7 + $0x1f8] sm:$0xff]
    %v157 = vld [vmem:[#allocation7 + $0x200] sm:$0xff]
    %v158 = vld [vmem:[#allocation7 + $0x208] sm:$0xff]
    %v159 = vld [vmem:[#allocation7 + $0x210] sm:$0xff]
    %v160 = vld [vmem:[#allocation7 + $0x218] sm:$0xff]
    %v161 = vld [vmem:[#allocation7 + $0x220] sm:$0xff]
    %v162 = vld [vmem:[#allocation7 + $0x228] sm:$0xff]
    %v163 = vld [vmem:[#allocation7 + $0x230] sm:$0xff]
    %v164 = vld [vmem:[#allocation7 + $0x238] sm:$0xff]
    %v165 = vld [vmem:[#allocation7 + $0x240] sm:$0xff]
    %v166 = vld [vmem:[#allocation7 + $0x248] sm:$0xff]
    %v167 = vld [vmem:[#allocation7 + $0x250] sm:$0xff]
    %v168 = vld [vmem:[#allocation7 + $0x258] sm:$0xff]
    %v169 = vld [vmem:[#allocation7 + $0x260] sm:$0xff]
    %v170 = vld [vmem:[#allocation7 + $0x268] sm:$0xff]
    %v171 = vld [vmem:[#allocation7 + $0x270] sm:$0xff]
    %v172 = vld [vmem:[#allocation7 + $0x278] sm:$0xff]
    %v173 = vld [vmem:[#allocation7 + $0x280] sm:$0xff]
    %v174 = vld [vmem:[#allocation7 + $0x288] sm:$0xff]
    %v175 = vld [vmem:[#allocation7 + $0x290] sm:$0xff]
    %v176 = vld [vmem:[#allocation7 + $0x298] sm:$0xff]
    %v177 = vld [vmem:[#allocation7 + $0x2a0] sm:$0xff]
    %v178 = vld [vmem:[#allocation7 + $0x2a8] sm:$0xff]
    %v179 = vld [vmem:[#allocation7 + $0x2b0] sm:$0xff]
    %v180 = vld [vmem:[#allocation7 + $0x2b8] sm:$0xff]
    %v181 = vld [vmem:[#allocation7 + $0x2c0] sm:$0xff]
    %v182 = vld [vmem:[#allocation7 + $0x2c8] sm:$0xff]
    %v183 = vld [vmem:[#allocation7 + $0x2d0] sm:$0xff]
    %v184 = vld [vmem:[#allocation7 + $0x2d8] sm:$0xff]
    %v185 = vld [vmem:[#allocation7 + $0x2e0] sm:$0xff]
    %v186 = vld [vmem:[#allocation7 + $0x2e8] sm:$0xff]
    %v187 = vld [vmem:[#allocation7 + $0x2f0] sm:$0xff]
    %v188 = vld [vmem:[#allocation7 + $0x2f8] sm:$0xff]
    %v189 = vld [vmem:[#allocation7 + $0x300] sm:$0xff]
    %v190 = vld [vmem:[#allocation7 + $0x308] sm:$0xff]
    %v191 = vld [vmem:[#allocation7 + $0x310] sm:$0xff]
    %v192 = vld [vmem:[#allocation7 + $0x318] sm:$0xff]
    %v193 = vld [vmem:[#allocation7 + $0x320] sm:$0xff]
    %v194 = vld [vmem:[#allocation7 + $0x328] sm:$0xff]
    %v195 = vld [vmem:[#allocation7 + $0x330] sm:$0xff]
    %v196 = vld [vmem:[#allocation7 + $0x338] sm:$0xff]
    %v197 = vld [vmem:[#allocation7 + $0x340] sm:$0xff]
    %v198 = vld [vmem:[#allocation7 + $0x348] sm:$0xff]
    %v199 = vld [vmem:[#allocation7 + $0x350] sm:$0xff]
    %v200 = vld [vmem:[#allocation7 + $0x358] sm:$0xff]
    %v201 = vld [vmem:[#allocation7 + $0x360] sm:$0xff]
    %v202 = vld [vmem:[#allocation7 + $0x368] sm:$0xff]
    %v203 = vld [vmem:[#allocation7 + $0x370] sm:$0xff]
    %v204 = vld [vmem:[#allocation7 + $0x378] sm:$0xff]
    %v205 = vld [vmem:[#allocation7 + $0x380] sm:$0xff]
    %v206 = vld [vmem:[#allocation7 + $0x388] sm:$0xff]
    %v207 = vld [vmem:[#allocation7 + $0x390] sm:$0xff]
    %v208 = vld [vmem:[#allocation7 + $0x398] sm:$0xff]
    %v209 = vld [vmem:[#allocation7 + $0x3a0] sm:$0xff]
    %v210 = vld [vmem:[#allocation7 + $0x3a8] sm:$0xff]
    %v211 = vld [vmem:[#allocation7 + $0x3b0] sm:$0xff]
    %v212 = vld [vmem:[#allocation7 + $0x3b8] sm:$0xff]
    %v213 = vld [vmem:[#allocation7 + $0x3c0] sm:$0xff]
    %v214 = vld [vmem:[#allocation7 + $0x3c8] sm:$0xff]
    %v215 = vld [vmem:[#allocation7 + $0x3d0] sm:$0xff]
    %v216 = vld [vmem:[#allocation7 + $0x3d8] sm:$0xff]
    %v217 = vld [vmem:[#allocation7 + $0x3e0] sm:$0xff]
    %v218 = vld [vmem:[#allocation7 + $0x3e8] sm:$0xff]
    %v219 = vld [vmem:[#allocation7 + $0x3f0] sm:$0xff]
    %v220 = vld [vmem:[#allocation7 + $0x3f8] sm:$0xff]
    %v221 = vld [vmem:[#allocation7 + $0x400] sm:$0xff]
    %v222 = vld [vmem:[#allocation7 + $0x408] sm:$0xff]
    %v223 = vld [vmem:[#allocation7 + $0x410] sm:$0xff]
    %v224 = vld [vmem:[#allocation7 + $0x418] sm:$0xff]
    %v225 = vld [vmem:[#allocation7 + $0x420] sm:$0xff]
    %v226 = vld [vmem:[#allocation7 + $0x428] sm:$0xff]
    %v227 = vld [vmem:[#allocation7 + $0x430] sm:$0xff]
    %v228 = vld [vmem:[#allocation7 + $0x438] sm:$0xff]
    %v229 = vld [vmem:[#allocation7 + $0x440] sm:$0xff]
    %v230 = vld [vmem:[#allocation7 + $0x448] sm:$0xff]
    %v231 = vld [vmem:[#allocation7 + $0x450] sm:$0xff]
    %v232 = vld [vmem:[#allocation7 + $0x458] sm:$0xff]
    %v233 = vld [vmem:[#allocation7 + $0x460] sm:$0xff]
    %v234 = vld [vmem:[#allocation7 + $0x468] sm:$0xff]
    %v235 = vld [vmem:[#allocation7 + $0x470] sm:$0xff]
    %v236 = vld [vmem:[#allocation7 + $0x478] sm:$0xff]
    %v237 = vld [vmem:[#allocation7 + $0x480] sm:$0xff]
    %v238 = vld [vmem:[#allocation7 + $0x488] sm:$0xff]
    %v239 = vld [vmem:[#allocation7 + $0x490] sm:$0xff]
    %v240 = vld [vmem:[#allocation7 + $0x498] sm:$0xff]
    %v241 = vld [vmem:[#allocation7 + $0x4a0] sm:$0xff]
    %v242 = vld [vmem:[#allocation7 + $0x4a8] sm:$0xff]
    %v243 = vld [vmem:[#allocation7 + $0x4b0] sm:$0xff]
    %v244 = vld [vmem:[#allocation7 + $0x4b8] sm:$0xff]
    %v245 = vld [vmem:[#allocation7 + $0x4c0] sm:$0xff]
    %v246 = vld [vmem:[#allocation7 + $0x4c8] sm:$0xff]
    %v247 = vld [vmem:[#allocation7 + $0x4d0] sm:$0xff]
    %v248 = vld [vmem:[#allocation7 + $0x4d8] sm:$0xff]
    %v249 = vld [vmem:[#allocation7 + $0x4e0] sm:$0xff]
    %v250 = vld [vmem:[#allocation7 + $0x4e8] sm:$0xff]
    %v251 = vld [vmem:[#allocation7 + $0x4f0] sm:$0xff]
    %v252 = vld [vmem:[#allocation7 + $0x4f8] sm:$0xff]
    %v253 = vld [vmem:[#allocation5] sm:$0xff]
    %v254 = vld [vmem:[#allocation5 + $0x8] sm:$0xff]
    %v255 = vld [vmem:[#allocation8] sm:$0xff]
    %v256 = vld [vmem:[#allocation8 + $0x8] sm:$0xff]
    %v257 = vld [vmem:[#allocation8 + $0x10] sm:$0xff]
    %v258 = vld [vmem:[#allocation8 + $0x18] sm:$0xff]
    %v259 = vld [vmem:[#allocation8 + $0x20] sm:$0xff]
    %v260 = vld [vmem:[#allocation8 + $0x28] sm:$0xff]
    %v261 = vld [vmem:[#allocation8 + $0x30] sm:$0xff]
    %v262 = vld [vmem:[#allocation8 + $0x38] sm:$0xff]
    %v263 = vld [vmem:[#allocation8 + $0x40] sm:$0xff]
    %v264 = vld [vmem:[#allocation8 + $0x48] sm:$0xff]
    %v265 = vld [vmem:[#allocation8 + $0x50] sm:$0xff]
    %v266 = vld [vmem:[#allocation8 + $0x58] sm:$0xff]
    %v267 = vld [vmem:[#allocation8 + $0x60] sm:$0xff]
    %v268 = vld [vmem:[#allocation8 + $0x68] sm:$0xff]
    %v269 = vld [vmem:[#allocation8 + $0x70] sm:$0xff]
    %v270 = vld [vmem:[#allocation8 + $0x78] sm:$0xff]
    %v271 = vld [vmem:[#allocation8 + $0x80] sm:$0xff]
    %v272 = vld [vmem:[#allocation8 + $0x88] sm:$0xff]
    %v273 = vld [vmem:[#allocation8 + $0x90] sm:$0xff]
    %v274 = vld [vmem:[#allocation8 + $0x98] sm:$0xff]
    %v275 = vld [vmem:[#allocation8 + $0xa0] sm:$0xff]
    %v276 = vld [vmem:[#allocation8 + $0xa8] sm:$0xff]
    %v277 = vld [vmem:[#allocation8 + $0xb0] sm:$0xff]
    %v278 = vld [vmem:[#allocation8 + $0xb8] sm:$0xff]
    %v279 = vld [vmem:[#allocation8 + $0xc0] sm:$0xff]
    %v280 = vld [vmem:[#allocation8 + $0xc8] sm:$0xff]
    %v281 = vld [vmem:[#allocation8 + $0xd0] sm:$0xff]
    %v282 = vld [vmem:[#allocation8 + $0xd8] sm:$0xff]
    %v283 = vld [vmem:[#allocation8 + $0xe0] sm:$0xff]
    %v284 = vld [vmem:[#allocation8 + $0xe8] sm:$0xff]
    %v285 = vld [vmem:[#allocation8 + $0xf0] sm:$0xff]
    %v286 = vld [vmem:[#allocation8 + $0xf8] sm:$0xff]
    %v287 = vld [vmem:[#allocation8 + $0x100] sm:$0xff]
    %v288 = vld [vmem:[#allocation8 + $0x108] sm:$0xff]
    %v289 = vld [vmem:[#allocation8 + $0x110] sm:$0xff]
    %v290 = vld [vmem:[#allocation8 + $0x118] sm:$0xff]
    %v291 = vld [vmem:[#allocation8 + $0x120] sm:$0xff]
    %v292 = vld [vmem:[#allocation8 + $0x128] sm:$0xff]
    %v293 = vld [vmem:[#allocation8 + $0x130] sm:$0xff]
    %v294 = vld [vmem:[#allocation8 + $0x138] sm:$0xff]
    %v295 = vld [vmem:[#allocation8 + $0x140] sm:$0xff]
    %v296 = vld [vmem:[#allocation8 + $0x148] sm:$0xff]
    %v297 = vld [vmem:[#allocation8 + $0x150] sm:$0xff]
    %v298 = vld [vmem:[#allocation8 + $0x158] sm:$0xff]
    %v299 = vld [vmem:[#allocation8 + $0x160] sm:$0xff]
    %v300 = vld [vmem:[#allocation8 + $0x168] sm:$0xff]
    %v301 = vld [vmem:[#allocation8 + $0x170] sm:$0xff]
    %v302 = vld [vmem:[#allocation8 + $0x178] sm:$0xff]
    %v303 = vld [vmem:[#allocation8 + $0x180] sm:$0xff]
    %v304 = vld [vmem:[#allocation8 + $0x188] sm:$0xff]
    %v305 = vld [vmem:[#allocation8 + $0x190] sm:$0xff]
    %v306 = vld [vmem:[#allocation8 + $0x198] sm:$0xff]
    %v307 = vld [vmem:[#allocation8 + $0x1a0] sm:$0xff]
    %v308 = vld [vmem:[#allocation8 + $0x1a8] sm:$0xff]
    %v309 = vld [vmem:[#allocation8 + $0x1b0] sm:$0xff]
    %v310 = vld [vmem:[#allocation8 + $0x1b8] sm:$0xff]
    %v311 = vld [vmem:[#allocation8 + $0x1c0] sm:$0xff]
    %v312 = vld [vmem:[#allocation8 + $0x1c8] sm:$0xff]
    %v313 = vld [vmem:[#allocation8 + $0x1d0] sm:$0xff]
    %v314 = vld [vmem:[#allocation8 + $0x1d8] sm:$0xff]
    %v315 = vld [vmem:[#allocation8 + $0x1e0] sm:$0xff]
    %v316 = vld [vmem:[#allocation8 + $0x1e8] sm:$0xff]
    %v317 = vld [vmem:[#allocation8 + $0x1f0] sm:$0xff]
    %v318 = vld [vmem:[#allocation8 + $0x1f8] sm:$0xff]
    %v319 = vld [vmem:[#allocation8 + $0x200] sm:$0xff]
    %v320 = vld [vmem:[#allocation8 + $0x208] sm:$0xff]
    %v321 = vld [vmem:[#allocation8 + $0x210] sm:$0xff]
    %v322 = vld [vmem:[#allocation8 + $0x218] sm:$0xff]
    %v323 = vld [vmem:[#allocation8 + $0x220] sm:$0xff]
    %v324 = vld [vmem:[#allocation8 + $0x228] sm:$0xff]
    %v325 = vld [vmem:[#allocation8 + $0x230] sm:$0xff]
    %v326 = vld [vmem:[#allocation8 + $0x238] sm:$0xff]
    %v327 = vld [vmem:[#allocation8 + $0x240] sm:$0xff]
    %v328 = vld [vmem:[#allocation8 + $0x248] sm:$0xff]
    %v329 = vld [vmem:[#allocation8 + $0x250] sm:$0xff]
    %v330 = vld [vmem:[#allocation8 + $0x258] sm:$0xff]
    %v331 = vld [vmem:[#allocation8 + $0x260] sm:$0xff]
    %v332 = vld [vmem:[#allocation8 + $0x268] sm:$0xff]
    %v333 = vld [vmem:[#allocation8 + $0x270] sm:$0xff]
    %v334 = vld [vmem:[#allocation8 + $0x278] sm:$0xff]
    %v335 = vld [vmem:[#allocation8 + $0x280] sm:$0xff]
    %v336 = vld [vmem:[#allocation8 + $0x288] sm:$0xff]
    %v337 = vld [vmem:[#allocation8 + $0x290] sm:$0xff]
    %v338 = vld [vmem:[#allocation8 + $0x298] sm:$0xff]
    %v339 = vld [vmem:[#allocation8 + $0x2a0] sm:$0xff]
    %v340 = vld [vmem:[#allocation8 + $0x2a8] sm:$0xff]
    %v341 = vld [vmem:[#allocation8 + $0x2b0] sm:$0xff]
    %v342 = vld [vmem:[#allocation8 + $0x2b8] sm:$0xff]
    %v343 = vld [vmem:[#allocation8 + $0x2c0] sm:$0xff]
    %v344 = vld [vmem:[#allocation8 + $0x2c8] sm:$0xff]
    %v345 = vld [vmem:[#allocation8 + $0x2d0] sm:$0xff]
    %v346 = vld [vmem:[#allocation8 + $0x2d8] sm:$0xff]
    %v347 = vld [vmem:[#allocation8 + $0x2e0] sm:$0xff]
    %v348 = vld [vmem:[#allocation8 + $0x2e8] sm:$0xff]
    %v349 = vld [vmem:[#allocation8 + $0x2f0] sm:$0xff]
    %v350 = vld [vmem:[#allocation8 + $0x2f8] sm:$0xff]
    %v351 = vld [vmem:[#allocation8 + $0x300] sm:$0xff]
    %v352 = vld [vmem:[#allocation8 + $0x308] sm:$0xff]
    %v353 = vld [vmem:[#allocation8 + $0x310] sm:$0xff]
    %v354 = vld [vmem:[#allocation8 + $0x318] sm:$0xff]
    %v355 = vld [vmem:[#allocation8 + $0x320] sm:$0xff]
    %v356 = vld [vmem:[#allocation8 + $0x328] sm:$0xff]
    %v357 = vld [vmem:[#allocation8 + $0x330] sm:$0xff]
    %v358 = vld [vmem:[#allocation8 + $0x338] sm:$0xff]
    %v359 = vld [vmem:[#allocation8 + $0x340] sm:$0xff]
    %v360 = vld [vmem:[#allocation8 + $0x348] sm:$0xff]
    %v361 = vld [vmem:[#allocation8 + $0x350] sm:$0xff]
    %v362 = vld [vmem:[#allocation8 + $0x358] sm:$0xff]
    %v363 = vld [vmem:[#allocation8 + $0x360] sm:$0xff]
    %v364 = vld [vmem:[#allocation8 + $0x368] sm:$0xff]
    %v365 = vld [vmem:[#allocation8 + $0x370] sm:$0xff]
    %v366 = vld [vmem:[#allocation8 + $0x378] sm:$0xff]
    %v367 = vld [vmem:[#allocation8 + $0x380] sm:$0xff]
    %v368 = vld [vmem:[#allocation8 + $0x388] sm:$0xff]
    %v369 = vld [vmem:[#allocation8 + $0x390] sm:$0xff]
    %v370 = vld [vmem:[#allocation8 + $0x398] sm:$0xff]
    %v371 = vld [vmem:[#allocation8 + $0x3a0] sm:$0xff]
    %v372 = vld [vmem:[#allocation8 + $0x3a8] sm:$0xff]
    %v373 = vld [vmem:[#allocation8 + $0x3b0] sm:$0xff]
    %v374 = vld [vmem:[#allocation8 + $0x3b8] sm:$0xff]
    %v375 = vld [vmem:[#allocation8 + $0x3c0] sm:$0xff]
    %v376 = vld [vmem:[#allocation8 + $0x3c8] sm:$0xff]
    %v377 = vld [vmem:[#allocation8 + $0x3d0] sm:$0xff]
    %v378 = vld [vmem:[#allocation8 + $0x3d8] sm:$0xff]
    %v379 = vld [vmem:[#allocation8 + $0x3e0] sm:$0xff]
    %v380 = vld [vmem:[#allocation8 + $0x3e8] sm:$0xff]
    %v381 = vld [vmem:[#allocation8 + $0x3f0] sm:$0xff]
    %v382 = vld [vmem:[#allocation8 + $0x3f8] sm:$0xff]
    %v385 = vunpack.c.l.b16 %v253
    %v386 = vunpack.c.h.b16 %v253
    %v387 = vunpack.c.l.b16 %v254
    %v388 = vunpack.c.h.b16 %v254
    %v389 = vpack.c.b16 %v385, %v385
    %v390 = vpack.c.b16 %v386, %v386
    %v391 = vpack.c.b16 %v387, %v387
    %v392 = vpack.c.b16 %v388, %v388
    %v525 = vunpack.c.l.b16 %v255
    %v526 = vunpack.c.h.b16 %v255
    %v527 = vunpack.c.l.b16 %v256
    %v528 = vunpack.c.h.b16 %v256
    %v529 = vunpack.c.l.b16 %v257
    %v530 = vunpack.c.h.b16 %v257
    %v531 = vunpack.c.l.b16 %v258
    %v532 = vunpack.c.h.b16 %v258
    %v533 = vunpack.c.l.b16 %v259
    %v534 = vunpack.c.h.b16 %v259
    %v535 = vunpack.c.l.b16 %v260
    %v536 = vunpack.c.h.b16 %v260
    %v537 = vunpack.c.l.b16 %v261
    %v538 = vunpack.c.h.b16 %v261
    %v539 = vunpack.c.l.b16 %v262
    %v540 = vunpack.c.h.b16 %v262
    %v541 = vunpack.c.l.b16 %v263
    %v542 = vunpack.c.h.b16 %v263
    %v543 = vunpack.c.l.b16 %v264
    %v544 = vunpack.c.h.b16 %v264
    %v545 = vunpack.c.l.b16 %v265
    %v546 = vunpack.c.h.b16 %v265
    %v547 = vunpack.c.l.b16 %v266
    %v548 = vunpack.c.h.b16 %v266
    %v549 = vunpack.c.l.b16 %v267
    %v550 = vunpack.c.h.b16 %v267
    %v551 = vunpack.c.l.b16 %v268
    %v552 = vunpack.c.h.b16 %v268
    %v553 = vunpack.c.l.b16 %v269
    %v554 = vunpack.c.h.b16 %v269
    %v555 = vunpack.c.l.b16 %v270
    %v556 = vunpack.c.h.b16 %v270
    %v557 = vunpack.c.l.b16 %v271
    %v558 = vunpack.c.h.b16 %v271
    %v559 = vunpack.c.l.b16 %v272
    %v560 = vunpack.c.h.b16 %v272
    %v561 = vunpack.c.l.b16 %v273
    %v562 = vunpack.c.h.b16 %v273
    %v563 = vunpack.c.l.b16 %v274
    %v564 = vunpack.c.h.b16 %v274
    %v565 = vunpack.c.l.b16 %v275
    %v566 = vunpack.c.h.b16 %v275
    %v567 = vunpack.c.l.b16 %v276
    %v568 = vunpack.c.h.b16 %v276
    %v569 = vunpack.c.l.b16 %v277
    %v570 = vunpack.c.h.b16 %v277
    %v571 = vunpack.c.l.b16 %v278
    %v572 = vunpack.c.h.b16 %v278
    %v573 = vunpack.c.l.b16 %v279
    %v574 = vunpack.c.h.b16 %v279
    %v575 = vunpack.c.l.b16 %v280
    %v576 = vunpack.c.h.b16 %v280
    %v577 = vunpack.c.l.b16 %v281
    %v578 = vunpack.c.h.b16 %v281
    %v579 = vunpack.c.l.b16 %v282
    %v580 = vunpack.c.h.b16 %v282
    %v581 = vunpack.c.l.b16 %v283
    %v582 = vunpack.c.h.b16 %v283
    %v583 = vunpack.c.l.b16 %v284
    %v584 = vunpack.c.h.b16 %v284
    %v585 = vunpack.c.l.b16 %v285
    %v586 = vunpack.c.h.b16 %v285
    %v587 = vunpack.c.l.b16 %v286
    %v588 = vunpack.c.h.b16 %v286
    %v589 = vunpack.c.l.b16 %v287
    %v590 = vunpack.c.h.b16 %v287
    %v591 = vunpack.c.l.b16 %v288
    %v592 = vunpack.c.h.b16 %v288
    %v593 = vunpack.c.l.b16 %v289
    %v594 = vunpack.c.h.b16 %v289
    %v595 = vunpack.c.l.b16 %v290
    %v596 = vunpack.c.h.b16 %v290
    %v597 = vunpack.c.l.b16 %v291
    %v598 = vunpack.c.h.b16 %v291
    %v599 = vunpack.c.l.b16 %v292
    %v600 = vunpack.c.h.b16 %v292
    %v601 = vunpack.c.l.b16 %v293
    %v602 = vunpack.c.h.b16 %v293
    %v603 = vunpack.c.l.b16 %v294
    %v604 = vunpack.c.h.b16 %v294
    %v605 = vunpack.c.l.b16 %v295
    %v606 = vunpack.c.h.b16 %v295
    %v607 = vunpack.c.l.b16 %v296
    %v608 = vunpack.c.h.b16 %v296
    %v609 = vunpack.c.l.b16 %v297
    %v610 = vunpack.c.h.b16 %v297
    %v611 = vunpack.c.l.b16 %v298
    %v612 = vunpack.c.h.b16 %v298
    %v613 = vunpack.c.l.b16 %v299
    %v614 = vunpack.c.h.b16 %v299
    %v615 = vunpack.c.l.b16 %v300
    %v616 = vunpack.c.h.b16 %v300
    %v617 = vunpack.c.l.b16 %v301
    %v618 = vunpack.c.h.b16 %v301
    %v619 = vunpack.c.l.b16 %v302
    %v620 = vunpack.c.h.b16 %v302
    %v621 = vunpack.c.l.b16 %v303
    %v622 = vunpack.c.h.b16 %v303
    %v623 = vunpack.c.l.b16 %v304
    %v624 = vunpack.c.h.b16 %v304
    %v625 = vunpack.c.l.b16 %v305
    %v626 = vunpack.c.h.b16 %v305
    %v627 = vunpack.c.l.b16 %v306
    %v628 = vunpack.c.h.b16 %v306
    %v629 = vunpack.c.l.b16 %v307
    %v630 = vunpack.c.h.b16 %v307
    %v631 = vunpack.c.l.b16 %v308
    %v632 = vunpack.c.h.b16 %v308
    %v633 = vunpack.c.l.b16 %v309
    %v634 = vunpack.c.h.b16 %v309
    %v635 = vunpack.c.l.b16 %v310
    %v636 = vunpack.c.h.b16 %v310
    %v637 = vunpack.c.l.b16 %v311
    %v638 = vunpack.c.h.b16 %v311
    %v639 = vunpack.c.l.b16 %v312
    %v640 = vunpack.c.h.b16 %v312
    %v641 = vunpack.c.l.b16 %v313
    %v642 = vunpack.c.h.b16 %v313
    %v643 = vunpack.c.l.b16 %v314
    %v644 = vunpack.c.h.b16 %v314
    %v645 = vunpack.c.l.b16 %v315
    %v646 = vunpack.c.h.b16 %v315
    %v647 = vunpack.c.l.b16 %v316
    %v648 = vunpack.c.h.b16 %v316
    %v649 = vunpack.c.l.b16 %v317
    %v650 = vunpack.c.h.b16 %v317
    %v651 = vunpack.c.l.b16 %v318
    %v652 = vunpack.c.h.b16 %v318
    %v653 = vunpack.c.l.b16 %v319
    %v654 = vunpack.c.h.b16 %v319
    %v655 = vunpack.c.l.b16 %v320
    %v656 = vunpack.c.h.b16 %v320
    %v657 = vunpack.c.l.b16 %v321
    %v658 = vunpack.c.h.b16 %v321
    %v659 = vunpack.c.l.b16 %v322
    %v660 = vunpack.c.h.b16 %v322
    %v661 = vunpack.c.l.b16 %v323
    %v662 = vunpack.c.h.b16 %v323
    %v663 = vunpack.c.l.b16 %v324
    %v664 = vunpack.c.h.b16 %v324
    %v665 = vunpack.c.l.b16 %v325
    %v666 = vunpack.c.h.b16 %v325
    %v667 = vunpack.c.l.b16 %v326
    %v668 = vunpack.c.h.b16 %v326
    %v669 = vunpack.c.l.b16 %v327
    %v670 = vunpack.c.h.b16 %v327
    %v671 = vunpack.c.l.b16 %v328
    %v672 = vunpack.c.h.b16 %v328
    %v673 = vunpack.c.l.b16 %v329
    %v674 = vunpack.c.h.b16 %v329
    %v675 = vunpack.c.l.b16 %v330
    %v676 = vunpack.c.h.b16 %v330
    %v677 = vunpack.c.l.b16 %v331
    %v678 = vunpack.c.h.b16 %v331
    %v679 = vunpack.c.l.b16 %v332
    %v680 = vunpack.c.h.b16 %v332
    %v681 = vunpack.c.l.b16 %v333
    %v682 = vunpack.c.h.b16 %v333
    %v683 = vunpack.c.l.b16 %v334
    %v684 = vunpack.c.h.b16 %v334
    %v685 = vunpack.c.l.b16 %v335
    %v686 = vunpack.c.h.b16 %v335
    %v687 = vunpack.c.l.b16 %v336
    %v688 = vunpack.c.h.b16 %v336
    %v689 = vunpack.c.l.b16 %v337
    %v690 = vunpack.c.h.b16 %v337
    %v691 = vunpack.c.l.b16 %v338
    %v692 = vunpack.c.h.b16 %v338
    %v693 = vunpack.c.l.b16 %v339
    %v694 = vunpack.c.h.b16 %v339
    %v695 = vunpack.c.l.b16 %v340
    %v696 = vunpack.c.h.b16 %v340
    %v697 = vunpack.c.l.b16 %v341
    %v698 = vunpack.c.h.b16 %v341
    %v699 = vunpack.c.l.b16 %v342
    %v700 = vunpack.c.h.b16 %v342
    %v701 = vunpack.c.l.b16 %v343
    %v702 = vunpack.c.h.b16 %v343
    %v703 = vunpack.c.l.b16 %v344
    %v704 = vunpack.c.h.b16 %v344
    %v705 = vunpack.c.l.b16 %v345
    %v706 = vunpack.c.h.b16 %v345
    %v707 = vunpack.c.l.b16 %v346
    %v708 = vunpack.c.h.b16 %v346
    %v709 = vunpack.c.l.b16 %v347
    %v710 = vunpack.c.h.b16 %v347
    %v711 = vunpack.c.l.b16 %v348
    %v712 = vunpack.c.h.b16 %v348
    %v713 = vunpack.c.l.b16 %v349
    %v714 = vunpack.c.h.b16 %v349
    %v715 = vunpack.c.l.b16 %v350
    %v716 = vunpack.c.h.b16 %v350
    %v717 = vunpack.c.l.b16 %v351
    %v718 = vunpack.c.h.b16 %v351
    %v719 = vunpack.c.l.b16 %v352
    %v720 = vunpack.c.h.b16 %v352
    %v721 = vunpack.c.l.b16 %v353
    %v722 = vunpack.c.h.b16 %v353
    %v723 = vunpack.c.l.b16 %v354
    %v724 = vunpack.c.h.b16 %v354
    %v725 = vunpack.c.l.b16 %v355
    %v726 = vunpack.c.h.b16 %v355
    %v727 = vunpack.c.l.b16 %v356
    %v728 = vunpack.c.h.b16 %v356
    %v729 = vunpack.c.l.b16 %v357
    %v730 = vunpack.c.h.b16 %v357
    %v731 = vunpack.c.l.b16 %v358
    %v732 = vunpack.c.h.b16 %v358
    %v733 = vunpack.c.l.b16 %v359
    %v734 = vunpack.c.h.b16 %v359
    %v735 = vunpack.c.l.b16 %v360
    %v736 = vunpack.c.h.b16 %v360
    %v737 = vunpack.c.l.b16 %v361
    %v738 = vunpack.c.h.b16 %v361
    %v739 = vunpack.c.l.b16 %v362
    %v740 = vunpack.c.h.b16 %v362
    %v741 = vunpack.c.l.b16 %v363
    %v742 = vunpack.c.h.b16 %v363
    %v743 = vunpack.c.l.b16 %v364
    %v744 = vunpack.c.h.b16 %v364
    %v745 = vunpack.c.l.b16 %v365
    %v746 = vunpack.c.h.b16 %v365
    %v747 = vunpack.c.l.b16 %v366
    %v748 = vunpack.c.h.b16 %v366
    %v749 = vunpack.c.l.b16 %v367
    %v750 = vunpack.c.h.b16 %v367
    %v751 = vunpack.c.l.b16 %v368
    %v752 = vunpack.c.h.b16 %v368
    %v753 = vunpack.c.l.b16 %v369
    %v754 = vunpack.c.h.b16 %v369
    %v755 = vunpack.c.l.b16 %v370
    %v756 = vunpack.c.h.b16 %v370
    %v757 = vunpack.c.l.b16 %v371
    %v758 = vunpack.c.h.b16 %v371
    %v759 = vunpack.c.l.b16 %v372
    %v760 = vunpack.c.h.b16 %v372
    %v761 = vunpack.c.l.b16 %v373
    %v762 = vunpack.c.h.b16 %v373
    %v763 = vunpack.c.l.b16 %v374
    %v764 = vunpack.c.h.b16 %v374
    %v765 = vunpack.c.l.b16 %v375
    %v766 = vunpack.c.h.b16 %v375
    %v767 = vunpack.c.l.b16 %v376
    %v768 = vunpack.c.h.b16 %v376
    %v769 = vunpack.c.l.b16 %v377
    %v770 = vunpack.c.h.b16 %v377
    %v771 = vunpack.c.l.b16 %v378
    %v772 = vunpack.c.h.b16 %v378
    %v773 = vunpack.c.l.b16 %v379
    %v774 = vunpack.c.h.b16 %v379
    %v775 = vunpack.c.l.b16 %v380
    %v776 = vunpack.c.h.b16 %v380
    %v777 = vunpack.c.l.b16 %v381
    %v778 = vunpack.c.h.b16 %v381
    %v779 = vunpack.c.l.b16 %v382
    %v780 = vunpack.c.h.b16 %v382
    %v781 = vpack.c.b16 %v529, %v525
    %v782 = vpack.c.b16 %v530, %v526
    %v783 = vpack.c.b16 %v531, %v527
    %v784 = vpack.c.b16 %v532, %v528
    %v785 = vpack.c.b16 %v537, %v533
    %v786 = vpack.c.b16 %v538, %v534
    %v787 = vpack.c.b16 %v539, %v535
    %v788 = vpack.c.b16 %v540, %v536
    %v789 = vpack.c.b16 %v545, %v541
    %v790 = vpack.c.b16 %v546, %v542
    %v791 = vpack.c.b16 %v547, %v543
    %v792 = vpack.c.b16 %v548, %v544
    %v793 = vpack.c.b16 %v553, %v549
    %v794 = vpack.c.b16 %v554, %v550
    %v795 = vpack.c.b16 %v555, %v551
    %v796 = vpack.c.b16 %v556, %v552
    %v797 = vpack.c.b16 %v561, %v557
    %v798 = vpack.c.b16 %v562, %v558
    %v799 = vpack.c.b16 %v563, %v559
    %v800 = vpack.c.b16 %v564, %v560
    %v801 = vpack.c.b16 %v569, %v565
    %v802 = vpack.c.b16 %v570, %v566
    %v803 = vpack.c.b16 %v571, %v567
    %v804 = vpack.c.b16 %v572, %v568
    %v805 = vpack.c.b16 %v577, %v573
    %v806 = vpack.c.b16 %v578, %v574
    %v807 = vpack.c.b16 %v579, %v575
    %v808 = vpack.c.b16 %v580, %v576
    %v809 = vpack.c.b16 %v585, %v581
    %v810 = vpack.c.b16 %v586, %v582
    %v811 = vpack.c.b16 %v587, %v583
    %v812 = vpack.c.b16 %v588, %v584
    %v813 = vpack.c.b16 %v593, %v589
    %v814 = vpack.c.b16 %v594, %v590
    %v815 = vpack.c.b16 %v595, %v591
    %v816 = vpack.c.b16 %v596, %v592
    %v817 = vpack.c.b16 %v601, %v597
    %v818 = vpack.c.b16 %v602, %v598
    %v819 = vpack.c.b16 %v603, %v599
    %v820 = vpack.c.b16 %v604, %v600
    %v821 = vpack.c.b16 %v609, %v605
    %v822 = vpack.c.b16 %v610, %v606
    %v823 = vpack.c.b16 %v611, %v607
    %v824 = vpack.c.b16 %v612, %v608
    %v825 = vpack.c.b16 %v617, %v613
    %v826 = vpack.c.b16 %v618, %v614
    %v827 = vpack.c.b16 %v619, %v615
    %v828 = vpack.c.b16 %v620, %v616
    %v829 = vpack.c.b16 %v625, %v621
    %v830 = vpack.c.b16 %v626, %v622
    %v831 = vpack.c.b16 %v627, %v623
    %v832 = vpack.c.b16 %v628, %v624
    %v833 = vpack.c.b16 %v633, %v629
    %v834 = vpack.c.b16 %v634, %v630
    %v835 = vpack.c.b16 %v635, %v631
    %v836 = vpack.c.b16 %v636, %v632
    %v837 = vpack.c.b16 %v641, %v637
    %v838 = vpack.c.b16 %v642, %v638
    %v839 = vpack.c.b16 %v643, %v639
    %v840 = vpack.c.b16 %v644, %v640
    %v841 = vpack.c.b16 %v649, %v645
    %v842 = vpack.c.b16 %v650, %v646
    %v843 = vpack.c.b16 %v651, %v647
    %v844 = vpack.c.b16 %v652, %v648
    %v845 = vpack.c.b16 %v657, %v653
    %v846 = vpack.c.b16 %v658, %v654
    %v847 = vpack.c.b16 %v659, %v655
    %v848 = vpack.c.b16 %v660, %v656
    %v849 = vpack.c.b16 %v665, %v661
    %v850 = vpack.c.b16 %v666, %v662
    %v851 = vpack.c.b16 %v667, %v663
    %v852 = vpack.c.b16 %v668, %v664
    %v853 = vpack.c.b16 %v673, %v669
    %v854 = vpack.c.b16 %v674, %v670
    %v855 = vpack.c.b16 %v675, %v671
    %v856 = vpack.c.b16 %v676, %v672
    %v857 = vpack.c.b16 %v681, %v677
    %v858 = vpack.c.b16 %v682, %v678
    %v859 = vpack.c.b16 %v683, %v679
    %v860 = vpack.c.b16 %v684, %v680
    %v861 = vpack.c.b16 %v689, %v685
    %v862 = vpack.c.b16 %v690, %v686
    %v863 = vpack.c.b16 %v691, %v687
    %v864 = vpack.c.b16 %v692, %v688
    %v865 = vpack.c.b16 %v697, %v693
    %v866 = vpack.c.b16 %v698, %v694
    %v867 = vpack.c.b16 %v699, %v695
    %v868 = vpack.c.b16 %v700, %v696
    %v869 = vpack.c.b16 %v705, %v701
    %v870 = vpack.c.b16 %v706, %v702
    %v871 = vpack.c.b16 %v707, %v703
    %v872 = vpack.c.b16 %v708, %v704
    %v873 = vpack.c.b16 %v713, %v709
    %v874 = vpack.c.b16 %v714, %v710
    %v875 = vpack.c.b16 %v715, %v711
    %v876 = vpack.c.b16 %v716, %v712
    %v877 = vpack.c.b16 %v721, %v717
    %v878 = vpack.c.b16 %v722, %v718
    %v879 = vpack.c.b16 %v723, %v719
    %v880 = vpack.c.b16 %v724, %v720
    %v881 = vpack.c.b16 %v729, %v725
    %v882 = vpack.c.b16 %v730, %v726
    %v883 = vpack.c.b16 %v731, %v727
    %v884 = vpack.c.b16 %v732, %v728
    %v885 = vpack.c.b16 %v737, %v733
    %v886 = vpack.c.b16 %v738, %v734
    %v887 = vpack.c.b16 %v739, %v735
    %v888 = vpack.c.b16 %v740, %v736
    %v889 = vpack.c.b16 %v745, %v741
    %v890 = vpack.c.b16 %v746, %v742
    %v891 = vpack.c.b16 %v747, %v743
    %v892 = vpack.c.b16 %v748, %v744
    %v893 = vpack.c.b16 %v753, %v749
    %v894 = vpack.c.b16 %v754, %v750
    %v895 = vpack.c.b16 %v755, %v751
    %v896 = vpack.c.b16 %v756, %v752
    %v897 = vpack.c.b16 %v761, %v757
    %v898 = vpack.c.b16 %v762, %v758
    %v899 = vpack.c.b16 %v763, %v759
    %v900 = vpack.c.b16 %v764, %v760
    %v901 = vpack.c.b16 %v769, %v765
    %v902 = vpack.c.b16 %v770, %v766
    %v903 = vpack.c.b16 %v771, %v767
    %v904 = vpack.c.b16 %v772, %v768
    %v905 = vpack.c.b16 %v777, %v773
    %v906 = vpack.c.b16 %v778, %v774
    %v907 = vpack.c.b16 %v779, %v775
    %v908 = vpack.c.b16 %v780, %v776
    %1037 = vmatprep.subr.bf16.mxu0 %v810
    %1038 = vmatpush1.bf16.msra.mxu0 %v809
    %1039 = vmatprep.subr.bf16.mxu0 %v806
    %1040 = vmatpush1.bf16.msra.mxu0 %v805
    %1041 = vmatprep.subr.bf16.mxu0 %v802
    %1042 = vmatpush1.bf16.msra.mxu0 %v801
    %1043 = vmatprep.subr.bf16.mxu0 %v798
    %1044 = vmatpush1.bf16.msra.mxu0 %v797
    %1045 = vmatprep.subr.bf16.mxu0 %v794
    %1046 = vmatpush1.bf16.msra.mxu0 %v793
    %1047 = vmatprep.subr.bf16.mxu0 %v790
    %1048 = vmatpush1.bf16.msra.mxu0 %v789
    %1049 = vmatprep.subr.bf16.mxu0 %v786
    %1050 = vmatpush1.bf16.msra.mxu0 %v785
    %1051 = vmatprep.subr.bf16.mxu0 %v782
    %1052 = vmatpush1.bf16.msra.mxu0 %v781
    %1053 = vmatprep.subr.bf16.mxu0 %v842
    %1054 = vmatpush2.bf16.msra.mxu0 %v841
    %1055 = vmatprep.subr.bf16.mxu0 %v838
    %1056 = vmatpush2.bf16.msra.mxu0 %v837
    %1057 = vmatprep.subr.bf16.mxu0 %v834
    %1058 = vmatpush2.bf16.msra.mxu0 %v833
    %1059 = vmatprep.subr.bf16.mxu0 %v830
    %1060 = vmatpush2.bf16.msra.mxu0 %v829
    %1061 = vmatprep.subr.bf16.mxu0 %v826
    %1062 = vmatpush2.bf16.msra.mxu0 %v825
    %1063 = vmatprep.subr.bf16.mxu0 %v822
    %1064 = vmatpush2.bf16.msra.mxu0 %v821
    %1065 = vmatprep.subr.bf16.mxu0 %v818
    %1066 = vmatpush2.bf16.msra.mxu0 %v817
    %1067 = vmatprep.subr.bf16.mxu0 %v814
    %1068 = vmatpush2.bf16.msra.mxu0 %v813
    %1069 = vmatprep.mubr.bf16.mxu0 %v390
    %1070 = vmatmul.mubr.bf16.gmra.mxu0 %v389
    %v1071 = vpop.f32.mrf.mxu0
    %v1072 = vadd.f32 0.0, %v1071
    %v1073 = vpop.f32.mrf.mxu0
    %v1074 = vadd.f32 0.0, %v1073
    %v1075 = vpop.f32.mrf.mxu0
    %v1076 = vpop.f32.mrf.mxu0
    %1077 = vdwg.mxu0
    %1078 = vmatprep.subr.bf16.mxu0 %v874
    %1079 = vmatpush1.bf16.msra.mxu0 %v873
    %1080 = vmatprep.subr.bf16.mxu0 %v870
    %1081 = vmatpush1.bf16.msra.mxu0 %v869
    %1082 = vmatprep.subr.bf16.mxu0 %v866
    %1083 = vmatpush1.bf16.msra.mxu0 %v865
    %1084 = vmatprep.subr.bf16.mxu0 %v862
    %1085 = vmatpush1.bf16.msra.mxu0 %v861
    %1086 = vmatprep.subr.bf16.mxu0 %v858
    %1087 = vmatpush1.bf16.msra.mxu0 %v857
    %1088 = vmatprep.subr.bf16.mxu0 %v854
    %1089 = vmatpush1.bf16.msra.mxu0 %v853
    %1090 = vmatprep.subr.bf16.mxu0 %v850
    %1091 = vmatpush1.bf16.msra.mxu0 %v849
    %1092 = vmatprep.subr.bf16.mxu0 %v846
    %1093 = vmatpush1.bf16.msra.mxu0 %v845
    %1094 = vmatprep.subr.bf16.mxu0 %v906
    %1095 = vmatpush2.bf16.msra.mxu0 %v905
    %1096 = vmatprep.subr.bf16.mxu0 %v902
    %1097 = vmatpush2.bf16.msra.mxu0 %v901
    %1098 = vmatprep.subr.bf16.mxu0 %v898
    %1099 = vmatpush2.bf16.msra.mxu0 %v897
    %1100 = vmatprep.subr.bf16.mxu0 %v894
    %1101 = vmatpush2.bf16.msra.mxu0 %v893
    %1102 = vmatprep.subr.bf16.mxu0 %v890
    %1103 = vmatpush2.bf16.msra.mxu0 %v889
    %1104 = vmatprep.subr.bf16.mxu0 %v886
    %1105 = vmatpush2.bf16.msra.mxu0 %v885
    %1106 = vmatprep.subr.bf16.mxu0 %v882
    %1107 = vmatpush2.bf16.msra.mxu0 %v881
    %1108 = vmatprep.subr.bf16.mxu0 %v878
    %1109 = vmatpush2.bf16.msra.mxu0 %v877
    %1110 = vmatprep.mubr.bf16.mxu0 %v392
    %1111 = vmatmul.mubr.bf16.gmra.mxu0 %v391
    %v1112 = vpop.f32.mrf.mxu0
    %v1113 = vadd.f32 %v1072, %v1112
    %v1114 = vpop.f32.mrf.mxu0
    %v1115 = vadd.f32 %v1074, %v1114
    %v1116 = vpop.f32.mrf.mxu0
    %v1117 = vpop.f32.mrf.mxu0
    %1118 = vdwg.mxu0
    %1119 = vmatprep.subr.bf16.mxu0 %v812
    %1120 = vmatpush1.bf16.msra.mxu0 %v811
    %1121 = vmatprep.subr.bf16.mxu0 %v808
    %1122 = vmatpush1.bf16.msra.mxu0 %v807
    %1123 = vmatprep.subr.bf16.mxu0 %v804
    %1124 = vmatpush1.bf16.msra.mxu0 %v803
    %1125 = vmatprep.subr.bf16.mxu0 %v800
    %1126 = vmatpush1.bf16.msra.mxu0 %v799
    %1127 = vmatprep.subr.bf16.mxu0 %v796
    %1128 = vmatpush1.bf16.msra.mxu0 %v795
    %1129 = vmatprep.subr.bf16.mxu0 %v792
    %1130 = vmatpush1.bf16.msra.mxu0 %v791
    %1131 = vmatprep.subr.bf16.mxu0 %v788
    %1132 = vmatpush1.bf16.msra.mxu0 %v787
    %1133 = vmatprep.subr.bf16.mxu0 %v784
    %1134 = vmatpush1.bf16.msra.mxu0 %v783
    %1135 = vmatprep.subr.bf16.mxu0 %v844
    %1136 = vmatpush2.bf16.msra.mxu0 %v843
    %1137 = vmatprep.subr.bf16.mxu0 %v840
    %1138 = vmatpush2.bf16.msra.mxu0 %v839
    %1139 = vmatprep.subr.bf16.mxu0 %v836
    %1140 = vmatpush2.bf16.msra.mxu0 %v835
    %1141 = vmatprep.subr.bf16.mxu0 %v832
    %1142 = vmatpush2.bf16.msra.mxu0 %v831
    %1143 = vmatprep.subr.bf16.mxu0 %v828
    %1144 = vmatpush2.bf16.msra.mxu0 %v827
    %1145 = vmatprep.subr.bf16.mxu0 %v824
    %1146 = vmatpush2.bf16.msra.mxu0 %v823
    %1147 = vmatprep.subr.bf16.mxu0 %v820
    %1148 = vmatpush2.bf16.msra.mxu0 %v819
    %1149 = vmatprep.subr.bf16.mxu0 %v816
    %1150 = vmatpush2.bf16.msra.mxu0 %v815
    %1151 = vmatprep.mubr.bf16.mxu0 %v390
    %1152 = vmatmul.mubr.bf16.gmra.mxu0 %v389
    %v1153 = vpop.f32.mrf.mxu0
    %v1154 = vadd.f32 0.0, %v1153
    %v1155 = vpop.f32.mrf.mxu0
    %v1156 = vadd.f32 0.0, %v1155
    %v1157 = vpop.f32.mrf.mxu0
    %v1158 = vpop.f32.mrf.mxu0
    %1159 = vdwg.mxu0
    %1160 = vmatprep.subr.bf16.mxu0 %v876
    %1161 = vmatpush1.bf16.msra.mxu0 %v875
    %1162 = vmatprep.subr.bf16.mxu0 %v872
    %1163 = vmatpush1.bf16.msra.mxu0 %v871
    %1164 = vmatprep.subr.bf16.mxu0 %v868
    %1165 = vmatpush1.bf16.msra.mxu0 %v867
    %1166 = vmatprep.subr.bf16.mxu0 %v864
    %1167 = vmatpush1.bf16.msra.mxu0 %v863
    %1168 = vmatprep.subr.bf16.mxu0 %v860
    %1169 = vmatpush1.bf16.msra.mxu0 %v859
    %1170 = vmatprep.subr.bf16.mxu0 %v856
    %1171 = vmatpush1.bf16.msra.mxu0 %v855
    %1172 = vmatprep.subr.bf16.mxu0 %v852
    %1173 = vmatpush1.bf16.msra.mxu0 %v851
    %1174 = vmatprep.subr.bf16.mxu0 %v848
    %1175 = vmatpush1.bf16.msra.mxu0 %v847
    %1176 = vmatprep.subr.bf16.mxu0 %v908
    %1177 = vmatpush2.bf16.msra.mxu0 %v907
    %1178 = vmatprep.subr.bf16.mxu0 %v904
    %1179 = vmatpush2.bf16.msra.mxu0 %v903
    %1180 = vmatprep.subr.bf16.mxu0 %v900
    %1181 = vmatpush2.bf16.msra.mxu0 %v899
    %1182 = vmatprep.subr.bf16.mxu0 %v896
    %1183 = vmatpush2.bf16.msra.mxu0 %v895
    %1184 = vmatprep.subr.bf16.mxu0 %v892
    %1185 = vmatpush2.bf16.msra.mxu0 %v891
    %1186 = vmatprep.subr.bf16.mxu0 %v888
    %1187 = vmatpush2.bf16.msra.mxu0 %v887
    %1188 = vmatprep.subr.bf16.mxu0 %v884
    %1189 = vmatpush2.bf16.msra.mxu0 %v883
    %1190 = vmatprep.subr.bf16.mxu0 %v880
    %1191 = vmatpush2.bf16.msra.mxu0 %v879
    %1192 = vmatprep.mubr.bf16.mxu0 %v392
    %1193 = vmatmul.mubr.bf16.gmra.mxu0 %v391
    %v1194 = vpop.f32.mrf.mxu0
    %v1195 = vadd.f32 %v1154, %v1194
    %v1196 = vpop.f32.mrf.mxu0
    %v1197 = vadd.f32 %v1156, %v1196
    %v1198 = vpop.f32.mrf.mxu0
    %v1199 = vpop.f32.mrf.mxu0
    %1200 = vdwg.mxu0
    %v1204 = vunpack.c.l.b16 %v90
    %v1205 = vunpack.c.h.b16 %v90
    %v1206 = vunpack.c.l.b16 %v91
    %v1207 = vunpack.c.h.b16 %v91
    %v1208 = vunpack.c.l.b16 %v92
    %v1209 = vpack.c.b16 %v1204, %v1204
    %v1210 = vpack.c.b16 %v1205, %v1205
    %v1211 = vpack.c.b16 %v1206, %v1206
    %v1212 = vpack.c.b16 %v1207, %v1207
    %v1213 = vpack.c.b16 %v1208, %v1208
    %v1379 = vunpack.c.l.b16 %v93
    %v1380 = vunpack.c.h.b16 %v93
    %v1381 = vunpack.c.l.b16 %v94
    %v1382 = vunpack.c.h.b16 %v94
    %v1383 = vunpack.c.l.b16 %v95
    %v1384 = vunpack.c.h.b16 %v95
    %v1385 = vunpack.c.l.b16 %v96
    %v1386 = vunpack.c.h.b16 %v96
    %v1387 = vunpack.c.l.b16 %v97
    %v1388 = vunpack.c.h.b16 %v97
    %v1389 = vunpack.c.l.b16 %v98
    %v1390 = vunpack.c.h.b16 %v98
    %v1391 = vunpack.c.l.b16 %v99
    %v1392 = vunpack.c.h.b16 %v99
    %v1393 = vunpack.c.l.b16 %v100
    %v1394 = vunpack.c.h.b16 %v100
    %v1395 = vunpack.c.l.b16 %v101
    %v1396 = vunpack.c.h.b16 %v101
    %v1397 = vunpack.c.l.b16 %v102
    %v1398 = vunpack.c.h.b16 %v102
    %v1399 = vunpack.c.l.b16 %v103
    %v1400 = vunpack.c.h.b16 %v103
    %v1401 = vunpack.c.l.b16 %v104
    %v1402 = vunpack.c.h.b16 %v104
    %v1403 = vunpack.c.l.b16 %v105
    %v1404 = vunpack.c.h.b16 %v105
    %v1405 = vunpack.c.l.b16 %v106
    %v1406 = vunpack.c.h.b16 %v106
    %v1407 = vunpack.c.l.b16 %v107
    %v1408 = vunpack.c.h.b16 %v107
    %v1409 = vunpack.c.l.b16 %v108
    %v1410 = vunpack.c.h.b16 %v108
    %v1411 = vunpack.c.l.b16 %v109
    %v1412 = vunpack.c.h.b16 %v109
    %v1413 = vunpack.c.l.b16 %v110
    %v1414 = vunpack.c.h.b16 %v110
    %v1415 = vunpack.c.l.b16 %v111
    %v1416 = vunpack.c.h.b16 %v111
    %v1417 = vunpack.c.l.b16 %v112
    %v1418 = vunpack.c.h.b16 %v112
    %v1419 = vunpack.c.l.b16 %v113
    %v1420 = vunpack.c.h.b16 %v113
    %v1421 = vunpack.c.l.b16 %v114
    %v1422 = vunpack.c.h.b16 %v114
    %v1423 = vunpack.c.l.b16 %v115
    %v1424 = vunpack.c.h.b16 %v115
    %v1425 = vunpack.c.l.b16 %v116
    %v1426 = vunpack.c.h.b16 %v116
    %v1427 = vunpack.c.l.b16 %v117
    %v1428 = vunpack.c.h.b16 %v117
    %v1429 = vunpack.c.l.b16 %v118
    %v1430 = vunpack.c.h.b16 %v118
    %v1431 = vunpack.c.l.b16 %v119
    %v1432 = vunpack.c.h.b16 %v119
    %v1433 = vunpack.c.l.b16 %v120
    %v1434 = vunpack.c.h.b16 %v120
    %v1435 = vunpack.c.l.b16 %v121
    %v1436 = vunpack.c.h.b16 %v121
    %v1437 = vunpack.c.l.b16 %v122
    %v1438 = vunpack.c.h.b16 %v122
    %v1439 = vunpack.c.l.b16 %v123
    %v1440 = vunpack.c.h.b16 %v123
    %v1441 = vunpack.c.l.b16 %v124
    %v1442 = vunpack.c.h.b16 %v124
    %v1443 = vunpack.c.l.b16 %v125
    %v1444 = vunpack.c.h.b16 %v125
    %v1445 = vunpack.c.l.b16 %v126
    %v1446 = vunpack.c.h.b16 %v126
    %v1447 = vunpack.c.l.b16 %v127
    %v1448 = vunpack.c.h.b16 %v127
    %v1449 = vunpack.c.l.b16 %v128
    %v1450 = vunpack.c.h.b16 %v128
    %v1451 = vunpack.c.l.b16 %v129
    %v1452 = vunpack.c.h.b16 %v129
    %v1453 = vunpack.c.l.b16 %v130
    %v1454 = vunpack.c.h.b16 %v130
    %v1455 = vunpack.c.l.b16 %v131
    %v1456 = vunpack.c.h.b16 %v131
    %v1457 = vunpack.c.l.b16 %v132
    %v1458 = vunpack.c.h.b16 %v132
    %v1459 = vunpack.c.l.b16 %v133
    %v1460 = vunpack.c.h.b16 %v133
    %v1461 = vunpack.c.l.b16 %v134
    %v1462 = vunpack.c.h.b16 %v134
    %v1463 = vunpack.c.l.b16 %v135
    %v1464 = vunpack.c.h.b16 %v135
    %v1465 = vunpack.c.l.b16 %v136
    %v1466 = vunpack.c.h.b16 %v136
    %v1467 = vunpack.c.l.b16 %v137
    %v1468 = vunpack.c.h.b16 %v137
    %v1469 = vunpack.c.l.b16 %v138
    %v1470 = vunpack.c.h.b16 %v138
    %v1471 = vunpack.c.l.b16 %v139
    %v1472 = vunpack.c.h.b16 %v139
    %v1473 = vunpack.c.l.b16 %v140
    %v1474 = vunpack.c.h.b16 %v140
    %v1475 = vunpack.c.l.b16 %v141
    %v1476 = vunpack.c.h.b16 %v141
    %v1477 = vunpack.c.l.b16 %v142
    %v1478 = vunpack.c.h.b16 %v142
    %v1479 = vunpack.c.l.b16 %v143
    %v1480 = vunpack.c.h.b16 %v143
    %v1481 = vunpack.c.l.b16 %v144
    %v1482 = vunpack.c.h.b16 %v144
    %v1483 = vunpack.c.l.b16 %v145
    %v1484 = vunpack.c.h.b16 %v145
    %v1485 = vunpack.c.l.b16 %v146
    %v1486 = vunpack.c.h.b16 %v146
    %v1487 = vunpack.c.l.b16 %v147
    %v1488 = vunpack.c.h.b16 %v147
    %v1489 = vunpack.c.l.b16 %v148
    %v1490 = vunpack.c.h.b16 %v148
    %v1491 = vunpack.c.l.b16 %v149
    %v1492 = vunpack.c.h.b16 %v149
    %v1493 = vunpack.c.l.b16 %v150
    %v1494 = vunpack.c.h.b16 %v150
    %v1495 = vunpack.c.l.b16 %v151
    %v1496 = vunpack.c.h.b16 %v151
    %v1497 = vunpack.c.l.b16 %v152
    %v1498 = vunpack.c.h.b16 %v152
    %v1499 = vunpack.c.l.b16 %v153
    %v1500 = vunpack.c.h.b16 %v153
    %v1501 = vunpack.c.l.b16 %v154
    %v1502 = vunpack.c.h.b16 %v154
    %v1503 = vunpack.c.l.b16 %v155
    %v1504 = vunpack.c.h.b16 %v155
    %v1505 = vunpack.c.l.b16 %v156
    %v1506 = vunpack.c.h.b16 %v156
    %v1507 = vunpack.c.l.b16 %v157
    %v1508 = vunpack.c.h.b16 %v157
    %v1509 = vunpack.c.l.b16 %v158
    %v1510 = vunpack.c.h.b16 %v158
    %v1511 = vunpack.c.l.b16 %v159
    %v1512 = vunpack.c.h.b16 %v159
    %v1513 = vunpack.c.l.b16 %v160
    %v1514 = vunpack.c.h.b16 %v160
    %v1515 = vunpack.c.l.b16 %v161
    %v1516 = vunpack.c.h.b16 %v161
    %v1517 = vunpack.c.l.b16 %v162
    %v1518 = vunpack.c.h.b16 %v162
    %v1519 = vunpack.c.l.b16 %v163
    %v1520 = vunpack.c.h.b16 %v163
    %v1521 = vunpack.c.l.b16 %v164
    %v1522 = vunpack.c.h.b16 %v164
    %v1523 = vunpack.c.l.b16 %v165
    %v1524 = vunpack.c.h.b16 %v165
    %v1525 = vunpack.c.l.b16 %v166
    %v1526 = vunpack.c.h.b16 %v166
    %v1527 = vunpack.c.l.b16 %v167
    %v1528 = vunpack.c.h.b16 %v167
    %v1529 = vunpack.c.l.b16 %v168
    %v1530 = vunpack.c.h.b16 %v168
    %v1531 = vunpack.c.l.b16 %v169
    %v1532 = vunpack.c.h.b16 %v169
    %v1533 = vunpack.c.l.b16 %v170
    %v1534 = vunpack.c.h.b16 %v170
    %v1535 = vunpack.c.l.b16 %v171
    %v1536 = vunpack.c.h.b16 %v171
    %v1537 = vunpack.c.l.b16 %v172
    %v1538 = vunpack.c.h.b16 %v172
    %v1539 = vunpack.c.l.b16 %v173
    %v1540 = vunpack.c.h.b16 %v173
    %v1541 = vunpack.c.l.b16 %v174
    %v1542 = vunpack.c.h.b16 %v174
    %v1543 = vunpack.c.l.b16 %v175
    %v1544 = vunpack.c.h.b16 %v175
    %v1545 = vunpack.c.l.b16 %v176
    %v1546 = vunpack.c.h.b16 %v176
    %v1547 = vunpack.c.l.b16 %v177
    %v1548 = vunpack.c.h.b16 %v177
    %v1549 = vunpack.c.l.b16 %v178
    %v1550 = vunpack.c.h.b16 %v178
    %v1551 = vunpack.c.l.b16 %v179
    %v1552 = vunpack.c.h.b16 %v179
    %v1553 = vunpack.c.l.b16 %v180
    %v1554 = vunpack.c.h.b16 %v180
    %v1555 = vunpack.c.l.b16 %v181
    %v1556 = vunpack.c.h.b16 %v181
    %v1557 = vunpack.c.l.b16 %v182
    %v1558 = vunpack.c.h.b16 %v182
    %v1559 = vunpack.c.l.b16 %v183
    %v1560 = vunpack.c.h.b16 %v183
    %v1561 = vunpack.c.l.b16 %v184
    %v1562 = vunpack.c.h.b16 %v184
    %v1563 = vunpack.c.l.b16 %v185
    %v1564 = vunpack.c.h.b16 %v185
    %v1565 = vunpack.c.l.b16 %v186
    %v1566 = vunpack.c.h.b16 %v186
    %v1567 = vunpack.c.l.b16 %v187
    %v1568 = vunpack.c.h.b16 %v187
    %v1569 = vunpack.c.l.b16 %v188
    %v1570 = vunpack.c.h.b16 %v188
    %v1571 = vunpack.c.l.b16 %v189
    %v1572 = vunpack.c.h.b16 %v189
    %v1573 = vunpack.c.l.b16 %v190
    %v1574 = vunpack.c.h.b16 %v190
    %v1575 = vunpack.c.l.b16 %v191
    %v1576 = vunpack.c.h.b16 %v191
    %v1577 = vunpack.c.l.b16 %v192
    %v1578 = vunpack.c.h.b16 %v192
    %v1579 = vunpack.c.l.b16 %v193
    %v1580 = vunpack.c.h.b16 %v193
    %v1581 = vunpack.c.l.b16 %v194
    %v1582 = vunpack.c.h.b16 %v194
    %v1583 = vunpack.c.l.b16 %v195
    %v1584 = vunpack.c.h.b16 %v195
    %v1585 = vunpack.c.l.b16 %v196
    %v1586 = vunpack.c.h.b16 %v196
    %v1587 = vunpack.c.l.b16 %v197
    %v1588 = vunpack.c.h.b16 %v197
    %v1589 = vunpack.c.l.b16 %v198
    %v1590 = vunpack.c.h.b16 %v198
    %v1591 = vunpack.c.l.b16 %v199
    %v1592 = vunpack.c.h.b16 %v199
    %v1593 = vunpack.c.l.b16 %v200
    %v1594 = vunpack.c.h.b16 %v200
    %v1595 = vunpack.c.l.b16 %v201
    %v1596 = vunpack.c.h.b16 %v201
    %v1597 = vunpack.c.l.b16 %v202
    %v1598 = vunpack.c.h.b16 %v202
    %v1599 = vunpack.c.l.b16 %v203
    %v1600 = vunpack.c.h.b16 %v203
    %v1601 = vunpack.c.l.b16 %v204
    %v1602 = vunpack.c.h.b16 %v204
    %v1603 = vunpack.c.l.b16 %v205
    %v1604 = vunpack.c.h.b16 %v205
    %v1605 = vunpack.c.l.b16 %v206
    %v1606 = vunpack.c.h.b16 %v206
    %v1607 = vunpack.c.l.b16 %v207
    %v1608 = vunpack.c.h.b16 %v207
    %v1609 = vunpack.c.l.b16 %v208
    %v1610 = vunpack.c.h.b16 %v208
    %v1611 = vunpack.c.l.b16 %v209
    %v1612 = vunpack.c.h.b16 %v209
    %v1613 = vunpack.c.l.b16 %v210
    %v1614 = vunpack.c.h.b16 %v210
    %v1615 = vunpack.c.l.b16 %v211
    %v1616 = vunpack.c.h.b16 %v211
    %v1617 = vunpack.c.l.b16 %v212
    %v1618 = vunpack.c.h.b16 %v212
    %v1619 = vunpack.c.l.b16 %v213
    %v1620 = vunpack.c.h.b16 %v213
    %v1621 = vunpack.c.l.b16 %v214
    %v1622 = vunpack.c.h.b16 %v214
    %v1623 = vunpack.c.l.b16 %v215
    %v1624 = vunpack.c.h.b16 %v215
    %v1625 = vunpack.c.l.b16 %v216
    %v1626 = vunpack.c.h.b16 %v216
    %v1627 = vunpack.c.l.b16 %v217
    %v1628 = vunpack.c.h.b16 %v217
    %v1629 = vunpack.c.l.b16 %v218
    %v1630 = vunpack.c.h.b16 %v218
    %v1631 = vunpack.c.l.b16 %v219
    %v1632 = vunpack.c.h.b16 %v219
    %v1633 = vunpack.c.l.b16 %v220
    %v1634 = vunpack.c.h.b16 %v220
    %v1635 = vunpack.c.l.b16 %v221
    %v1636 = vunpack.c.h.b16 %v221
    %v1637 = vunpack.c.l.b16 %v222
    %v1638 = vunpack.c.h.b16 %v222
    %v1639 = vunpack.c.l.b16 %v223
    %v1640 = vunpack.c.h.b16 %v223
    %v1641 = vunpack.c.l.b16 %v224
    %v1642 = vunpack.c.h.b16 %v224
    %v1643 = vunpack.c.l.b16 %v225
    %v1644 = vunpack.c.h.b16 %v225
    %v1645 = vunpack.c.l.b16 %v226
    %v1646 = vunpack.c.h.b16 %v226
    %v1647 = vunpack.c.l.b16 %v227
    %v1648 = vunpack.c.h.b16 %v227
    %v1649 = vunpack.c.l.b16 %v228
    %v1650 = vunpack.c.h.b16 %v228
    %v1651 = vunpack.c.l.b16 %v229
    %v1652 = vunpack.c.h.b16 %v229
    %v1653 = vunpack.c.l.b16 %v230
    %v1654 = vunpack.c.h.b16 %v230
    %v1655 = vunpack.c.l.b16 %v231
    %v1656 = vunpack.c.h.b16 %v231
    %v1657 = vunpack.c.l.b16 %v232
    %v1658 = vunpack.c.h.b16 %v232
    %v1659 = vunpack.c.l.b16 %v233
    %v1660 = vunpack.c.h.b16 %v233
    %v1661 = vunpack.c.l.b16 %v234
    %v1662 = vunpack.c.h.b16 %v234
    %v1663 = vunpack.c.l.b16 %v235
    %v1664 = vunpack.c.h.b16 %v235
    %v1665 = vunpack.c.l.b16 %v236
    %v1666 = vunpack.c.h.b16 %v236
    %v1667 = vunpack.c.l.b16 %v237
    %v1668 = vunpack.c.h.b16 %v237
    %v1669 = vunpack.c.l.b16 %v238
    %v1670 = vunpack.c.h.b16 %v238
    %v1671 = vunpack.c.l.b16 %v239
    %v1672 = vunpack.c.h.b16 %v239
    %v1673 = vunpack.c.l.b16 %v240
    %v1674 = vunpack.c.h.b16 %v240
    %v1675 = vunpack.c.l.b16 %v241
    %v1676 = vunpack.c.h.b16 %v241
    %v1677 = vunpack.c.l.b16 %v242
    %v1678 = vunpack.c.h.b16 %v242
    %v1679 = vunpack.c.l.b16 %v243
    %v1680 = vunpack.c.h.b16 %v243
    %v1681 = vunpack.c.l.b16 %v244
    %v1682 = vunpack.c.h.b16 %v244
    %v1683 = vunpack.c.l.b16 %v245
    %v1684 = vunpack.c.h.b16 %v245
    %v1685 = vunpack.c.l.b16 %v246
    %v1686 = vunpack.c.h.b16 %v246
    %v1687 = vunpack.c.l.b16 %v247
    %v1688 = vunpack.c.h.b16 %v247
    %v1689 = vunpack.c.l.b16 %v248
    %v1690 = vunpack.c.h.b16 %v248
    %v1691 = vunpack.c.l.b16 %v249
    %v1692 = vunpack.c.h.b16 %v249
    %v1693 = vunpack.c.l.b16 %v250
    %v1694 = vunpack.c.h.b16 %v250
    %v1695 = vunpack.c.l.b16 %v251
    %v1696 = vunpack.c.h.b16 %v251
    %v1697 = vunpack.c.l.b16 %v252
    %v1698 = vunpack.c.h.b16 %v252
    %v1699 = vpack.c.b16 %v1383, %v1379
    %v1700 = vpack.c.b16 %v1384, %v1380
    %v1701 = vpack.c.b16 %v1385, %v1381
    %v1702 = vpack.c.b16 %v1386, %v1382
    %v1703 = vpack.c.b16 %v1391, %v1387
    %v1704 = vpack.c.b16 %v1392, %v1388
    %v1705 = vpack.c.b16 %v1393, %v1389
    %v1706 = vpack.c.b16 %v1394, %v1390
    %v1707 = vpack.c.b16 %v1399, %v1395
    %v1708 = vpack.c.b16 %v1400, %v1396
    %v1709 = vpack.c.b16 %v1401, %v1397
    %v1710 = vpack.c.b16 %v1402, %v1398
    %v1711 = vpack.c.b16 %v1407, %v1403
    %v1712 = vpack.c.b16 %v1408, %v1404
    %v1713 = vpack.c.b16 %v1409, %v1405
    %v1714 = vpack.c.b16 %v1410, %v1406
    %v1715 = vpack.c.b16 %v1415, %v1411
    %v1716 = vpack.c.b16 %v1416, %v1412
    %v1717 = vpack.c.b16 %v1417, %v1413
    %v1718 = vpack.c.b16 %v1418, %v1414
    %v1719 = vpack.c.b16 %v1423, %v1419
    %v1720 = vpack.c.b16 %v1424, %v1420
    %v1721 = vpack.c.b16 %v1425, %v1421
    %v1722 = vpack.c.b16 %v1426, %v1422
    %v1723 = vpack.c.b16 %v1431, %v1427
    %v1724 = vpack.c.b16 %v1432, %v1428
    %v1725 = vpack.c.b16 %v1433, %v1429
    %v1726 = vpack.c.b16 %v1434, %v1430
    %v1727 = vpack.c.b16 %v1439, %v1435
    %v1728 = vpack.c.b16 %v1440, %v1436
    %v1729 = vpack.c.b16 %v1441, %v1437
    %v1730 = vpack.c.b16 %v1442, %v1438
    %v1731 = vpack.c.b16 %v1447, %v1443
    %v1732 = vpack.c.b16 %v1448, %v1444
    %v1733 = vpack.c.b16 %v1449, %v1445
    %v1734 = vpack.c.b16 %v1450, %v1446
    %v1735 = vpack.c.b16 %v1455, %v1451
    %v1736 = vpack.c.b16 %v1456, %v1452
    %v1737 = vpack.c.b16 %v1457, %v1453
    %v1738 = vpack.c.b16 %v1458, %v1454
    %v1739 = vpack.c.b16 %v1463, %v1459
    %v1740 = vpack.c.b16 %v1464, %v1460
    %v1741 = vpack.c.b16 %v1465, %v1461
    %v1742 = vpack.c.b16 %v1466, %v1462
    %v1743 = vpack.c.b16 %v1471, %v1467
    %v1744 = vpack.c.b16 %v1472, %v1468
    %v1745 = vpack.c.b16 %v1473, %v1469
    %v1746 = vpack.c.b16 %v1474, %v1470
    %v1747 = vpack.c.b16 %v1479, %v1475
    %v1748 = vpack.c.b16 %v1480, %v1476
    %v1749 = vpack.c.b16 %v1481, %v1477
    %v1750 = vpack.c.b16 %v1482, %v1478
    %v1751 = vpack.c.b16 %v1487, %v1483
    %v1752 = vpack.c.b16 %v1488, %v1484
    %v1753 = vpack.c.b16 %v1489, %v1485
    %v1754 = vpack.c.b16 %v1490, %v1486
    %v1755 = vpack.c.b16 %v1495, %v1491
    %v1756 = vpack.c.b16 %v1496, %v1492
    %v1757 = vpack.c.b16 %v1497, %v1493
    %v1758 = vpack.c.b16 %v1498, %v1494
    %v1759 = vpack.c.b16 %v1503, %v1499
    %v1760 = vpack.c.b16 %v1504, %v1500
    %v1761 = vpack.c.b16 %v1505, %v1501
    %v1762 = vpack.c.b16 %v1506, %v1502
    %v1763 = vpack.c.b16 %v1511, %v1507
    %v1764 = vpack.c.b16 %v1512, %v1508
    %v1765 = vpack.c.b16 %v1513, %v1509
    %v1766 = vpack.c.b16 %v1514, %v1510
    %v1767 = vpack.c.b16 %v1519, %v1515
    %v1768 = vpack.c.b16 %v1520, %v1516
    %v1769 = vpack.c.b16 %v1521, %v1517
    %v1770 = vpack.c.b16 %v1522, %v1518
    %v1771 = vpack.c.b16 %v1527, %v1523
    %v1772 = vpack.c.b16 %v1528, %v1524
    %v1773 = vpack.c.b16 %v1529, %v1525
    %v1774 = vpack.c.b16 %v1530, %v1526
    %v1775 = vpack.c.b16 %v1535, %v1531
    %v1776 = vpack.c.b16 %v1536, %v1532
    %v1777 = vpack.c.b16 %v1537, %v1533
    %v1778 = vpack.c.b16 %v1538, %v1534
    %v1779 = vpack.c.b16 %v1543, %v1539
    %v1780 = vpack.c.b16 %v1544, %v1540
    %v1781 = vpack.c.b16 %v1545, %v1541
    %v1782 = vpack.c.b16 %v1546, %v1542
    %v1783 = vpack.c.b16 %v1551, %v1547
    %v1784 = vpack.c.b16 %v1552, %v1548
    %v1785 = vpack.c.b16 %v1553, %v1549
    %v1786 = vpack.c.b16 %v1554, %v1550
    %v1787 = vpack.c.b16 %v1559, %v1555
    %v1788 = vpack.c.b16 %v1560, %v1556
    %v1789 = vpack.c.b16 %v1561, %v1557
    %v1790 = vpack.c.b16 %v1562, %v1558
    %v1791 = vpack.c.b16 %v1567, %v1563
    %v1792 = vpack.c.b16 %v1568, %v1564
    %v1793 = vpack.c.b16 %v1569, %v1565
    %v1794 = vpack.c.b16 %v1570, %v1566
    %v1795 = vpack.c.b16 %v1575, %v1571
    %v1796 = vpack.c.b16 %v1576, %v1572
    %v1797 = vpack.c.b16 %v1577, %v1573
    %v1798 = vpack.c.b16 %v1578, %v1574
    %v1799 = vpack.c.b16 %v1583, %v1579
    %v1800 = vpack.c.b16 %v1584, %v1580
    %v1801 = vpack.c.b16 %v1585, %v1581
    %v1802 = vpack.c.b16 %v1586, %v1582
    %v1803 = vpack.c.b16 %v1591, %v1587
    %v1804 = vpack.c.b16 %v1592, %v1588
    %v1805 = vpack.c.b16 %v1593, %v1589
    %v1806 = vpack.c.b16 %v1594, %v1590
    %v1807 = vpack.c.b16 %v1599, %v1595
    %v1808 = vpack.c.b16 %v1600, %v1596
    %v1809 = vpack.c.b16 %v1601, %v1597
    %v1810 = vpack.c.b16 %v1602, %v1598
    %v1811 = vpack.c.b16 %v1607, %v1603
    %v1812 = vpack.c.b16 %v1608, %v1604
    %v1813 = vpack.c.b16 %v1609, %v1605
    %v1814 = vpack.c.b16 %v1610, %v1606
    %v1815 = vpack.c.b16 %v1615, %v1611
    %v1816 = vpack.c.b16 %v1616, %v1612
    %v1817 = vpack.c.b16 %v1617, %v1613
    %v1818 = vpack.c.b16 %v1618, %v1614
    %v1819 = vpack.c.b16 %v1623, %v1619
    %v1820 = vpack.c.b16 %v1624, %v1620
    %v1821 = vpack.c.b16 %v1625, %v1621
    %v1822 = vpack.c.b16 %v1626, %v1622
    %v1823 = vpack.c.b16 %v1631, %v1627
    %v1824 = vpack.c.b16 %v1632, %v1628
    %v1825 = vpack.c.b16 %v1633, %v1629
    %v1826 = vpack.c.b16 %v1634, %v1630
    %v1827 = vpack.c.b16 %v1639, %v1635
    %v1828 = vpack.c.b16 %v1640, %v1636
    %v1829 = vpack.c.b16 %v1641, %v1637
    %v1830 = vpack.c.b16 %v1642, %v1638
    %v1831 = vpack.c.b16 %v1647, %v1643
    %v1832 = vpack.c.b16 %v1648, %v1644
    %v1833 = vpack.c.b16 %v1649, %v1645
    %v1834 = vpack.c.b16 %v1650, %v1646
    %v1835 = vpack.c.b16 %v1655, %v1651
    %v1836 = vpack.c.b16 %v1656, %v1652
    %v1837 = vpack.c.b16 %v1657, %v1653
    %v1838 = vpack.c.b16 %v1658, %v1654
    %v1839 = vpack.c.b16 %v1663, %v1659
    %v1840 = vpack.c.b16 %v1664, %v1660
    %v1841 = vpack.c.b16 %v1665, %v1661
    %v1842 = vpack.c.b16 %v1666, %v1662
    %v1843 = vpack.c.b16 %v1671, %v1667
    %v1844 = vpack.c.b16 %v1672, %v1668
    %v1845 = vpack.c.b16 %v1673, %v1669
    %v1846 = vpack.c.b16 %v1674, %v1670
    %v1847 = vpack.c.b16 %v1679, %v1675
    %v1848 = vpack.c.b16 %v1680, %v1676
    %v1849 = vpack.c.b16 %v1681, %v1677
    %v1850 = vpack.c.b16 %v1682, %v1678
    %v1851 = vpack.c.b16 %v1687, %v1683
    %v1852 = vpack.c.b16 %v1688, %v1684
    %v1853 = vpack.c.b16 %v1689, %v1685
    %v1854 = vpack.c.b16 %v1690, %v1686
    %v1855 = vpack.c.b16 %v1695, %v1691
    %v1856 = vpack.c.b16 %v1696, %v1692
    %v1857 = vpack.c.b16 %v1697, %v1693
    %v1858 = vpack.c.b16 %v1698, %v1694
    %2019 = vmatprep.subr.bf16.mxu0 %v1728
    %2020 = vmatpush1.bf16.msra.mxu0 %v1727
    %2021 = vmatprep.subr.bf16.mxu0 %v1724
    %2022 = vmatpush1.bf16.msra.mxu0 %v1723
    %2023 = vmatprep.subr.bf16.mxu0 %v1720
    %2024 = vmatpush1.bf16.msra.mxu0 %v1719
    %2025 = vmatprep.subr.bf16.mxu0 %v1716
    %2026 = vmatpush1.bf16.msra.mxu0 %v1715
    %2027 = vmatprep.subr.bf16.mxu0 %v1712
    %2028 = vmatpush1.bf16.msra.mxu0 %v1711
    %2029 = vmatprep.subr.bf16.mxu0 %v1708
    %2030 = vmatpush1.bf16.msra.mxu0 %v1707
    %2031 = vmatprep.subr.bf16.mxu0 %v1704
    %2032 = vmatpush1.bf16.msra.mxu0 %v1703
    %2033 = vmatprep.subr.bf16.mxu0 %v1700
    %2034 = vmatpush1.bf16.msra.mxu0 %v1699
    %2035 = vmatprep.subr.bf16.mxu0 %v1760
    %2036 = vmatpush2.bf16.msra.mxu0 %v1759
    %2037 = vmatprep.subr.bf16.mxu0 %v1756
    %2038 = vmatpush2.bf16.msra.mxu0 %v1755
    %2039 = vmatprep.subr.bf16.mxu0 %v1752
    %2040 = vmatpush2.bf16.msra.mxu0 %v1751
    %2041 = vmatprep.subr.bf16.mxu0 %v1748
    %2042 = vmatpush2.bf16.msra.mxu0 %v1747
    %2043 = vmatprep.subr.bf16.mxu0 %v1744
    %2044 = vmatpush2.bf16.msra.mxu0 %v1743
    %2045 = vmatprep.subr.bf16.mxu0 %v1740
    %2046 = vmatpush2.bf16.msra.mxu0 %v1739
    %2047 = vmatprep.subr.bf16.mxu0 %v1736
    %2048 = vmatpush2.bf16.msra.mxu0 %v1735
    %2049 = vmatprep.subr.bf16.mxu0 %v1732
    %2050 = vmatpush2.bf16.msra.mxu0 %v1731
    %2051 = vmatprep.mubr.bf16.mxu0 %v1210
    %2052 = vmatmul.mubr.bf16.gmra.mxu0 %v1209
    %v2053 = vpop.f32.mrf.mxu0
    %v2054 = vadd.f32 %v1113, %v2053
    %v2055 = vpop.f32.mrf.mxu0
    %v2056 = vadd.f32 %v1115, %v2055
    %v2057 = vpop.f32.mrf.mxu0
    %v2058 = vpop.f32.mrf.mxu0
    %2059 = vdwg.mxu0
    %2060 = vmatprep.subr.bf16.mxu0 %v1792
    %2061 = vmatpush1.bf16.msra.mxu0 %v1791
    %2062 = vmatprep.subr.bf16.mxu0 %v1788
    %2063 = vmatpush1.bf16.msra.mxu0 %v1787
    %2064 = vmatprep.subr.bf16.mxu0 %v1784
    %2065 = vmatpush1.bf16.msra.mxu0 %v1783
    %2066 = vmatprep.subr.bf16.mxu0 %v1780
    %2067 = vmatpush1.bf16.msra.mxu0 %v1779
    %2068 = vmatprep.subr.bf16.mxu0 %v1776
    %2069 = vmatpush1.bf16.msra.mxu0 %v1775
    %2070 = vmatprep.subr.bf16.mxu0 %v1772
    %2071 = vmatpush1.bf16.msra.mxu0 %v1771
    %2072 = vmatprep.subr.bf16.mxu0 %v1768
    %2073 = vmatpush1.bf16.msra.mxu0 %v1767
    %2074 = vmatprep.subr.bf16.mxu0 %v1764
    %2075 = vmatpush1.bf16.msra.mxu0 %v1763
    %2076 = vmatprep.subr.bf16.mxu0 %v1824
    %2077 = vmatpush2.bf16.msra.mxu0 %v1823
    %2078 = vmatprep.subr.bf16.mxu0 %v1820
    %2079 = vmatpush2.bf16.msra.mxu0 %v1819
    %2080 = vmatprep.subr.bf16.mxu0 %v1816
    %2081 = vmatpush2.bf16.msra.mxu0 %v1815
    %2082 = vmatprep.subr.bf16.mxu0 %v1812
    %2083 = vmatpush2.bf16.msra.mxu0 %v1811
    %2084 = vmatprep.subr.bf16.mxu0 %v1808
    %2085 = vmatpush2.bf16.msra.mxu0 %v1807
    %2086 = vmatprep.subr.bf16.mxu0 %v1804
    %2087 = vmatpush2.bf16.msra.mxu0 %v1803
    %2088 = vmatprep.subr.bf16.mxu0 %v1800
    %2089 = vmatpush2.bf16.msra.mxu0 %v1799
    %2090 = vmatprep.subr.bf16.mxu0 %v1796
    %2091 = vmatpush2.bf16.msra.mxu0 %v1795
    %2092 = vmatprep.mubr.bf16.mxu0 %v1212
    %2093 = vmatmul.mubr.bf16.gmra.mxu0 %v1211
    %v2094 = vpop.f32.mrf.mxu0
    %v2095 = vadd.f32 %v2054, %v2094
    %v2096 = vpop.f32.mrf.mxu0
    %v2097 = vadd.f32 %v2056, %v2096
    %v2098 = vpop.f32.mrf.mxu0
    %v2099 = vpop.f32.mrf.mxu0
    %2100 = vdwg.mxu0
    %2101 = vmatprep.subr.bf16.mxu0 %v1856
    %2102 = vmatpush1.bf16.msra.mxu0 %v1855
    %2103 = vmatprep.subr.bf16.mxu0 %v1852
    %2104 = vmatpush1.bf16.msra.mxu0 %v1851
    %2105 = vmatprep.subr.bf16.mxu0 %v1848
    %2106 = vmatpush1.bf16.msra.mxu0 %v1847
    %2107 = vmatprep.subr.bf16.mxu0 %v1844
    %2108 = vmatpush1.bf16.msra.mxu0 %v1843
    %2109 = vmatprep.subr.bf16.mxu0 %v1840
    %2110 = vmatpush1.bf16.msra.mxu0 %v1839
    %2111 = vmatprep.subr.bf16.mxu0 %v1836
    %2112 = vmatpush1.bf16.msra.mxu0 %v1835
    %2113 = vmatprep.subr.bf16.mxu0 %v1832
    %2114 = vmatpush1.bf16.msra.mxu0 %v1831
    %2115 = vmatprep.subr.bf16.mxu0 %v1828
    %2116 = vmatpush1.bf16.msra.mxu0 %v1827
    %2117 = vmatprep.subr.bf16.mxu0 0
    %2118 = vmatpush2.bf16.msra.mxu0 0
    %2119 = vmatprep.subr.bf16.mxu0 0
    %2120 = vmatpush2.bf16.msra.mxu0 0
    %2121 = vmatprep.subr.bf16.mxu0 0
    %2122 = vmatpush2.bf16.msra.mxu0 0
    %2123 = vmatprep.subr.bf16.mxu0 0
    %2124 = vmatpush2.bf16.msra.mxu0 0
    %2125 = vmatprep.subr.bf16.mxu0 0
    %2126 = vmatpush2.bf16.msra.mxu0 0
    %2127 = vmatprep.subr.bf16.mxu0 0
    %2128 = vmatpush2.bf16.msra.mxu0 0
    %2129 = vmatprep.subr.bf16.mxu0 0
    %2130 = vmatpush2.bf16.msra.mxu0 0
    %2131 = vmatprep.subr.bf16.mxu0 0
    %2132 = vmatpush2.bf16.msra.mxu0 0
    %2133 = vmatprep.mubr.bf16.mxu0 0
    %2134 = vmatmul.mubr.bf16.gmra.mxu0 %v1213
    %v2135 = vpop.f32.mrf.mxu0
    %v2136 = vadd.f32 %v2095, %v2135
    %v2137 = vpop.f32.mrf.mxu0
    %v2138 = vadd.f32 %v2097, %v2137
    %v2139 = vpop.f32.mrf.mxu0
    %v2140 = vpop.f32.mrf.mxu0
    %2141 = vdwg.mxu0
    %2142 = vmatprep.subr.bf16.mxu0 %v1730
    %2143 = vmatpush1.bf16.msra.mxu0 %v1729
    %2144 = vmatprep.subr.bf16.mxu0 %v1726
    %2145 = vmatpush1.bf16.msra.mxu0 %v1725
    %2146 = vmatprep.subr.bf16.mxu0 %v1722
    %2147 = vmatpush1.bf16.msra.mxu0 %v1721
    %2148 = vmatprep.subr.bf16.mxu0 %v1718
    %2149 = vmatpush1.bf16.msra.mxu0 %v1717
    %2150 = vmatprep.subr.bf16.mxu0 %v1714
    %2151 = vmatpush1.bf16.msra.mxu0 %v1713
    %2152 = vmatprep.subr.bf16.mxu0 %v1710
    %2153 = vmatpush1.bf16.msra.mxu0 %v1709
    %2154 = vmatprep.subr.bf16.mxu0 %v1706
    %2155 = vmatpush1.bf16.msra.mxu0 %v1705
    %2156 = vmatprep.subr.bf16.mxu0 %v1702
    %2157 = vmatpush1.bf16.msra.mxu0 %v1701
    %2158 = vmatprep.subr.bf16.mxu0 %v1762
    %2159 = vmatpush2.bf16.msra.mxu0 %v1761
    %2160 = vmatprep.subr.bf16.mxu0 %v1758
    %2161 = vmatpush2.bf16.msra.mxu0 %v1757
    %2162 = vmatprep.subr.bf16.mxu0 %v1754
    %2163 = vmatpush2.bf16.msra.mxu0 %v1753
    %2164 = vmatprep.subr.bf16.mxu0 %v1750
    %2165 = vmatpush2.bf16.msra.mxu0 %v1749
    %2166 = vmatprep.subr.bf16.mxu0 %v1746
    %2167 = vmatpush2.bf16.msra.mxu0 %v1745
    %2168 = vmatprep.subr.bf16.mxu0 %v1742
    %2169 = vmatpush2.bf16.msra.mxu0 %v1741
    %2170 = vmatprep.subr.bf16.mxu0 %v1738
    %2171 = vmatpush2.bf16.msra.mxu0 %v1737
    %2172 = vmatprep.subr.bf16.mxu0 %v1734
    %2173 = vmatpush2.bf16.msra.mxu0 %v1733
    %2174 = vmatprep.mubr.bf16.mxu0 %v1210
    %2175 = vmatmul.mubr.bf16.gmra.mxu0 %v1209
    %v2176 = vpop.f32.mrf.mxu0
    %v2177 = vadd.f32 %v1195, %v2176
    %v2178 = vpop.f32.mrf.mxu0
    %v2179 = vadd.f32 %v1197, %v2178
    %v2180 = vpop.f32.mrf.mxu0
    %v2181 = vpop.f32.mrf.mxu0
    %2182 = vdwg.mxu0
    %2183 = vmatprep.subr.bf16.mxu0 %v1794
    %2184 = vmatpush1.bf16.msra.mxu0 %v1793
    %2185 = vmatprep.subr.bf16.mxu0 %v1790
    %2186 = vmatpush1.bf16.msra.mxu0 %v1789
    %2187 = vmatprep.subr.bf16.mxu0 %v1786
    %2188 = vmatpush1.bf16.msra.mxu0 %v1785
    %2189 = vmatprep.subr.bf16.mxu0 %v1782
    %2190 = vmatpush1.bf16.msra.mxu0 %v1781
    %2191 = vmatprep.subr.bf16.mxu0 %v1778
    %2192 = vmatpush1.bf16.msra.mxu0 %v1777
    %2193 = vmatprep.subr.bf16.mxu0 %v1774
    %2194 = vmatpush1.bf16.msra.mxu0 %v1773
    %2195 = vmatprep.subr.bf16.mxu0 %v1770
    %2196 = vmatpush1.bf16.msra.mxu0 %v1769
    %2197 = vmatprep.subr.bf16.mxu0 %v1766
    %2198 = vmatpush1.bf16.msra.mxu0 %v1765
    %2199 = vmatprep.subr.bf16.mxu0 %v1826
    %2200 = vmatpush2.bf16.msra.mxu0 %v1825
    %2201 = vmatprep.subr.bf16.mxu0 %v1822
    %2202 = vmatpush2.bf16.msra.mxu0 %v1821
    %2203 = vmatprep.subr.bf16.mxu0 %v1818
    %2204 = vmatpush2.bf16.msra.mxu0 %v1817
    %2205 = vmatprep.subr.bf16.mxu0 %v1814
    %2206 = vmatpush2.bf16.msra.mxu0 %v1813
    %2207 = vmatprep.subr.bf16.mxu0 %v1810
    %2208 = vmatpush2.bf16.msra.mxu0 %v1809
    %2209 = vmatprep.subr.bf16.mxu0 %v1806
    %2210 = vmatpush2.bf16.msra.mxu0 %v1805
    %2211 = vmatprep.subr.bf16.mxu0 %v1802
    %2212 = vmatpush2.bf16.msra.mxu0 %v1801
    %2213 = vmatprep.subr.bf16.mxu0 %v1798
    %2214 = vmatpush2.bf16.msra.mxu0 %v1797
    %2215 = vmatprep.mubr.bf16.mxu0 %v1212
    %2216 = vmatmul.mubr.bf16.gmra.mxu0 %v1211
    %v2217 = vpop.f32.mrf.mxu0
    %v2218 = vadd.f32 %v2177, %v2217
    %v2219 = vpop.f32.mrf.mxu0
    %v2220 = vadd.f32 %v2179, %v2219
    %v2221 = vpop.f32.mrf.mxu0
    %v2222 = vpop.f32.mrf.mxu0
    %2223 = vdwg.mxu0
    %2224 = vmatprep.subr.bf16.mxu0 %v1858
    %2225 = vmatpush1.bf16.msra.mxu0 %v1857
    %2226 = vmatprep.subr.bf16.mxu0 %v1854
    %2227 = vmatpush1.bf16.msra.mxu0 %v1853
    %2228 = vmatprep.subr.bf16.mxu0 %v1850
    %2229 = vmatpush1.bf16.msra.mxu0 %v1849
    %2230 = vmatprep.subr.bf16.mxu0 %v1846
    %2231 = vmatpush1.bf16.msra.mxu0 %v1845
    %2232 = vmatprep.subr.bf16.mxu0 %v1842
    %2233 = vmatpush1.bf16.msra.mxu0 %v1841
    %2234 = vmatprep.subr.bf16.mxu0 %v1838
    %2235 = vmatpush1.bf16.msra.mxu0 %v1837
    %2236 = vmatprep.subr.bf16.mxu0 %v1834
    %2237 = vmatpush1.bf16.msra.mxu0 %v1833
    %2238 = vmatprep.subr.bf16.mxu0 %v1830
    %2239 = vmatpush1.bf16.msra.mxu0 %v1829
    %2240 = vmatprep.subr.bf16.mxu0 0
    %2241 = vmatpush2.bf16.msra.mxu0 0
    %2242 = vmatprep.subr.bf16.mxu0 0
    %2243 = vmatpush2.bf16.msra.mxu0 0
    %2244 = vmatprep.subr.bf16.mxu0 0
    %2245 = vmatpush2.bf16.msra.mxu0 0
    %2246 = vmatprep.subr.bf16.mxu0 0
    %2247 = vmatpush2.bf16.msra.mxu0 0
    %2248 = vmatprep.subr.bf16.mxu0 0
    %2249 = vmatpush2.bf16.msra.mxu0 0
    %2250 = vmatprep.subr.bf16.mxu0 0
    %2251 = vmatpush2.bf16.msra.mxu0 0
    %2252 = vmatprep.subr.bf16.mxu0 0
    %2253 = vmatpush2.bf16.msra.mxu0 0
    %2254 = vmatprep.subr.bf16.mxu0 0
    %2255 = vmatpush2.bf16.msra.mxu0 0
    %2256 = vmatprep.mubr.bf16.mxu0 0
    %2257 = vmatmul.mubr.bf16.gmra.mxu0 %v1213
    %v2258 = vpop.f32.mrf.mxu0
    %v2259 = vadd.f32 %v2218, %v2258
    %v2260 = vpop.f32.mrf.mxu0
    %v2261 = vadd.f32 %v2220, %v2260
    %v2262 = vpop.f32.mrf.mxu0
    %v2263 = vpop.f32.mrf.mxu0
    %2264 = vdwg.mxu0
    %v2265 = vld [vmem:[%s4] sm:$0xf]
    %v2267 = vlaneseq
    %v2268 = vshrl.u32 %v2267, 7
    %v2269 = vsub.s32 0, %v2268
    %v2270 = vrot.slane %v2265, %v2269
    %v2271 = vlaneseq
    %v2272 = vshrl.u32 %v2271, 7
    %v2273 = vsub.s32 1, %v2272
    %v2274 = vrot.slane %v2265, %v2273
    %v2275 = vlaneseq
    %v2276 = vshrl.u32 %v2275, 7
    %v2277 = vsub.s32 2, %v2276
    %v2278 = vrot.slane %v2265, %v2277
    %v2279 = vlaneseq
    %v2280 = vshrl.u32 %v2279, 7
    %v2281 = vsub.s32 3, %v2280
    %v2282 = vrot.slane %v2265, %v2281
    %v2287 = vadd.f32 %v2136, %v2270
    %v2288 = vadd.f32 %v2138, %v2274
    %v2289 = vadd.f32 %v2259, %v2278
    %v2290 = vadd.f32 %v2261, %v2282
    %v2291 = vmul.f32 %v2287, 0.5
    %v2292 = vmul.f32 %v2288, 0.5
    %v2293 = vmul.f32 %v2289, 0.5
    %v2294 = vmul.f32 %v2290, 0.5
    %v2295 = vmul.f32 %v2287, 0.70710677
    %v2296 = vmul.f32 %v2288, 0.70710677
    %v2297 = vmul.f32 %v2289, 0.70710677
    %v2298 = vmul.f32 %v2290, 0.70710677
    %v2299 = verf.f32.pop %v2295
    %v2300 = verf.f32.pop %v2296
    %v2301 = verf.f32.pop %v2297
    %v2302 = verf.f32.pop %v2298
    %v2303 = vadd.f32 %v2299, 1.0
    %v2304 = vadd.f32 %v2300, 1.0
    %v2305 = vadd.f32 %v2301, 1.0
    %v2306 = vadd.f32 %v2302, 1.0
    %v2307 = vmul.f32 %v2291, %v2303
    %v2308 = vmul.f32 %v2292, %v2304
    %v2309 = vmul.f32 %v2293, %v2305
    %v2310 = vmul.f32 %v2294, %v2306
    %v2311 = vadd.f32 %v2307, %v2308
    %v2312 = vadd.f32 %v2311, %v2309
    %v2313 = vadd.f32 %v2312, %v2310
    %2314 = vadd.xlane.f32.xlu0 %v2313
    %v2315 = vpop.xlane.xlu0 %2314
    %v2316 = vrcp.pop 512.0
    %v2317 = vmul.f32 %v2315, %v2316
    %v2318 = vsub.f32 %v2307, %v2317
    %v2319 = vsub.f32 %v2308, %v2317
    %v2320 = vsub.f32 %v2309, %v2317
    %v2321 = vsub.f32 %v2310, %v2317
    %v2322 = vmul.f32 %v2318, %v2318
    %v2323 = vmul.f32 %v2319, %v2319
    %v2324 = vmul.f32 %v2320, %v2320
    %v2325 = vmul.f32 %v2321, %v2321
    %v2326 = vadd.f32 %v2322, %v2323
    %v2327 = vadd.f32 %v2326, %v2324
    %v2328 = vadd.f32 %v2327, %v2325
    %2329 = vadd.xlane.f32.xlu0 %v2328
    %v2330 = vpop.xlane.xlu0 %2329
    %v2331 = vmul.f32 %v2330, %v2316
    %v2332 = vadd.f32 %v2331, 1e-05
    %v2333 = vrsqrt.pop %v2332
    %v2334 = vmul.f32 %v2318, %v2333
    %v2335 = vmul.f32 %v2319, %v2333
    %v2336 = vmul.f32 %v2320, %v2333
    %v2337 = vmul.f32 %v2321, %v2333
    %v2338 = vld [vmem:[%s5] sm:$0xf]
    %v2340 = vlaneseq
    %v2341 = vshrl.u32 %v2340, 7
    %v2342 = vsub.s32 0, %v2341
    %v2343 = vrot.slane %v2338, %v2342
    %v2344 = vlaneseq
    %v2345 = vshrl.u32 %v2344, 7
    %v2346 = vsub.s32 1, %v2345
    %v2347 = vrot.slane %v2338, %v2346
    %v2348 = vlaneseq
    %v2349 = vshrl.u32 %v2348, 7
    %v2350 = vsub.s32 2, %v2349
    %v2351 = vrot.slane %v2338, %v2350
    %v2352 = vlaneseq
    %v2353 = vshrl.u32 %v2352, 7
    %v2354 = vsub.s32 3, %v2353
    %v2355 = vrot.slane %v2338, %v2354
    %v2360 = vmul.f32 %v2334, %v2343
    %v2361 = vmul.f32 %v2335, %v2347
    %v2362 = vmul.f32 %v2336, %v2351
    %v2363 = vmul.f32 %v2337, %v2355
    %v2364 = vld [vmem:[#allocation10] sm:$0xf]
    %v2366 = vlaneseq
    %v2367 = vshrl.u32 %v2366, 7
    %v2368 = vsub.s32 0, %v2367
    %v2369 = vrot.slane %v2364, %v2368
    %v2370 = vlaneseq
    %v2371 = vshrl.u32 %v2370, 7
    %v2372 = vsub.s32 1, %v2371
    %v2373 = vrot.slane %v2364, %v2372
    %v2374 = vlaneseq
    %v2375 = vshrl.u32 %v2374, 7
    %v2376 = vsub.s32 2, %v2375
    %v2377 = vrot.slane %v2364, %v2376
    %v2378 = vlaneseq
    %v2379 = vshrl.u32 %v2378, 7
    %v2380 = vsub.s32 3, %v2379
    %v2381 = vrot.slane %v2364, %v2380
    %v2386 = vadd.f32 %v2360, %v2369
    %v2387 = vadd.f32 %v2361, %v2373
    %v2388 = vadd.f32 %v2362, %v2377
    %v2389 = vadd.f32 %v2363, %v2381
    %2390 = vst [vmem:[#allocation11] sm:$0xff] %v2386
    %2391 = vst [vmem:[#allocation11 + $0x8] sm:$0xff] %v2387
    %2392 = vst [vmem:[#allocation11 + $0x10] sm:$0xff] %v2388
    %2393 = vst [vmem:[#allocation11 + $0x18] sm:$0xff] %v2389
    // Predicated region
    $region50: #{tpu_custom_call.1} parent=1 // pred_check
      _
    $region51: #{tpu_custom_call.1} parent=1 // pred_check_branch
      %2395 = sbr.rel (0) target = $region53
    $region52: #{tpu_custom_call.1} parent=1 // pred_region
      %s2397 = ssub.s32 512, 512
      %2398 = vsyncadd [#allocation4], %s2397
      %s2400 = sshll.u32 [#allocation11], 4
      %s2401 = int_to_ptr.vmem [resolvable:$true] %s2400
      %2403 = dma.vmem_to_hbm [thread:$0]  %s2401, 512, %s7, [#allocation4]
    $region53: #{tpu_custom_call.1} parent=1 // pred_fallthru
      _
    // Predicated region
    $region54: #{tpu_custom_call.1} parent=1 // pred_check
      _
    $region55: #{tpu_custom_call.1} parent=1 // pred_check_branch
      %2405 = sbr.rel (0) target = $region57
    $region56: #{tpu_custom_call.1} parent=1 // pred_region
      %2406 = dma.done [#allocation4], 512
    $region57: #{tpu_custom_call.1} parent=1 // pred_fallthru
      _
    %2407 = vsyncpa [#allocation3], 1
    %2408 = vsyncpa [#allocation6], 1
    %2409 = vsyncpa [#allocation9], 1
    %2410 = vsyncpa [#allocation4], 1

</llo_original>
